<compile_context>
chip_gen: v7x
topology: tpu7x:2x2x1
jax: 0.10.0
libtpu: 0.0.40
codegen_flags: <defaults>
</compile_context>

<pallas_src>
import jax
import jax.numpy as jnp
from jax.experimental import pallas as pl
from jax.experimental.pallas import tpu as pltpu

# ----------------------------- problem sizes --------------------------------
N, CIN, H, W = 2, 3, 16, 24          # H/4 * W/4 * 64 == 1536 -> matches Linear(1536, 10)
COUT = 64                            # conv output channels
KH = KW = 3
K = KH * KW * CIN                    # 27 real contraction taps
KPAD = 32                            # K padded for the MXU / lane alignment
POOL = 4
HP, WP = H // POOL, W // POOL
P = HP * WP                          # 24 pooled spatial positions per image
PN = N * P                           # 48 pooled rows total
FEAT = COUT * P                      # 1536 == Linear in_features
NCLASS = 10
BN_EPS = 1e-5
M = N * H * W                        # 768 conv-output pixels (rows of the conv matmul)


# ------------------------------- fused kernel -------------------------------
def fused_kernel(patches_ref, wtap_ref, cb_ref, gamma_ref, beta_ref,
                 gcat_ref, mask_ref, scol_ref, fcb_ref, out_ref):
    # ---- Conv2d(3,64,3,pad=1): ONE K=32 MXU matmul (bf16 in, f32 accumulate) ----
    z = jnp.dot(patches_ref[...], wtap_ref[...],
                preferred_element_type=jnp.float32)          # (M, COUT) f32
    z = z + cb_ref[...]                                       # conv bias

    # ---- BatchNorm2d(64) training-mode stats in ONE pass (sum & sum-of-squares
    #      via MXU dots against a ones row), fused with ReLU ----
    onesr = jnp.ones((1, M), jnp.float32)
    s1 = jnp.dot(onesr, z, preferred_element_type=jnp.float32)      # (1, COUT)
    s2 = jnp.dot(onesr, z * z, preferred_element_type=jnp.float32)  # (1, COUT)
    mean = s1 * (1.0 / M)
    var = s2 * (1.0 / M) - mean * mean                        # biased var, like torch
    y = jnp.maximum(
        (z - mean) * jax.lax.rsqrt(var + BN_EPS) * gamma_ref[...] + beta_ref[...],
        0.0)                                                   # (M, COUT)

    # ---- AvgPool2d(4): patch rows were pre-ordered (n, window, in-window-pixel),
    #      so window q covers rows 16q..16q+15.  Pooling matrix is generated
    #      in-kernel (no 147 KiB HBM constant) and applied with one MXU dot. ----
    qi = jax.lax.broadcasted_iota(jnp.int32, (PN, M), 0)
    mi = jax.lax.broadcasted_iota(jnp.int32, (PN, M), 1)
    lo = qi * (POOL * POOL)
    poolmat = jnp.where((mi >= lo) & (mi < lo + POOL * POOL),
                        1.0 / (POOL * POOL), 0.0)              # (PN, M) f32
    pooled = jnp.dot(poolmat, y, preferred_element_type=jnp.float32)   # (PN, COUT)

    # ---- view(N,-1) [flatten order (c, hp, wp)] + Linear(1536, 10), relayout-free:
    #      r[(n,p), p'*10+o] = sum_c pooled[(n,p),c] * fc_w[o, c*P+p'];
    #      keep only p'==p blocks, sum the blocks per class, then sum rows per batch.
    r = jnp.dot(pooled, gcat_ref[...], preferred_element_type=jnp.float32)   # (PN, P*NCLASS)
    t = jnp.dot(r * mask_ref[...], scol_ref[...],
                preferred_element_type=jnp.float32)            # (PN, NCLASS)
    # batch row-sum matrix srow[n, q] = 1[n*P <= q < (n+1)*P], generated in-kernel
    ni = jax.lax.broadcasted_iota(jnp.int32, (N, PN), 0)
    qi2 = jax.lax.broadcasted_iota(jnp.int32, (N, PN), 1)
    qlo = ni * P
    srow = jnp.where((qi2 >= qlo) & (qi2 < qlo + P), 1.0, 0.0)  # (N, PN)
    out_ref[...] = (jnp.dot(srow, t, preferred_element_type=jnp.float32)
                    + fcb_ref[...])                            # (N, NCLASS)


# --------------------------- wrapper-side prep --------------------------------
def _im2col_reordered(x):
    """NCHW -> (M, KPAD) bf16 patch matrix.

    Row order is (n, pool_window p, in-window pixel k) so that AvgPool2d(4) becomes a
    sum over 16 consecutive rows inside the kernel.  K order is (dy, dx, cin), padded
    27 -> 32 with zeros.
    """
    xn = jnp.pad(x.transpose(0, 2, 3, 1), ((0, 0), (1, 1), (1, 1), (0, 0)))  # (N,H+2,W+2,CIN)
    taps = [xn[:, dy:dy + H, dx:dx + W, :] for dy in range(KH) for dx in range(KW)]
    p = jnp.stack(taps, axis=3).reshape(N, H, W, K)            # (N,H,W,27), K=(dy,dx,c)
    p = (p.reshape(N, HP, POOL, WP, POOL, K)
          .transpose(0, 1, 3, 2, 4, 5)                        # (N,HP,WP,4,4,27)
          .reshape(M, K))
    p = jnp.pad(p, ((0, 0), (0, KPAD - K)))
    return p.astype(jnp.bfloat16)


def _fc_constants():
    """Block-diagonal FC helper constants (pure functions of indices)."""
    q = jnp.arange(PN)
    j = jnp.arange(P * NCLASS)
    # mask[q, p'*10+o] keeps only the column block whose p' matches the row's p
    mask = ((q[:, None] % P) == (j[None, :] // NCLASS)).astype(jnp.float32)   # (PN, P*NCLASS)
    # scol[j, o] sums the surviving blocks per class o
    scol = ((j[:, None] % NCLASS) == jnp.arange(NCLASS)[None, :]).astype(jnp.float32)
    return mask, scol


def my_network_forward(x, params):
    # activation-side glue: im2col + pool-window row ordering (~50 KiB, pure XLA)
    patches = _im2col_reordered(x)

    # weight prep (cheap XLA reshapes/permutes executed per call)
    wtap = params["conv_w"].transpose(2, 3, 1, 0).reshape(K, COUT)           # [(dy,dx,c), cout]
    wtap = jnp.pad(wtap, ((0, KPAD - K), (0, 0))).astype(jnp.bfloat16)       # (32, 64)
    cb = params["conv_b"].reshape(1, COUT).astype(jnp.float32)
    gamma = params["bn_gamma"].reshape(1, COUT).astype(jnp.float32)
    beta = params["bn_beta"].reshape(1, COUT).astype(jnp.float32)
    # gcat[c, p*10+o] = fc_w[o, c*P + p]  (matches view(N,-1) flatten order (c, hp, wp))
    gcat = (params["fc_w"].reshape(NCLASS, COUT, P)
            .transpose(1, 2, 0).reshape(COUT, P * NCLASS)).astype(jnp.float32)
    fcb = params["fc_b"].reshape(1, NCLASS).astype(jnp.float32)
    mask, scol = _fc_constants()

    # TODO(synk): self.blocks (MyNetwork2 stacks) skipped — MyNetwork2 undefined in source.
    return pl.pallas_call(
        fused_kernel,
        out_shape=jax.ShapeDtypeStruct((N, NCLASS), jnp.float32),
        grid=(1,),
        in_specs=[
            pl.BlockSpec((M, KPAD),           lambda i: (0, 0)),   # im2col patches (bf16)
            pl.BlockSpec((KPAD, COUT),        lambda i: (0, 0)),   # conv weight taps (bf16)
            pl.BlockSpec((1, COUT),           lambda i: (0, 0)),   # conv bias
            pl.BlockSpec((1, COUT),           lambda i: (0, 0)),   # bn gamma
            pl.BlockSpec((1, COUT),           lambda i: (0, 0)),   # bn beta
            pl.BlockSpec((COUT, P * NCLASS),  lambda i: (0, 0)),   # fc weight blocks (gcat)
            pl.BlockSpec((PN, P * NCLASS),    lambda i: (0, 0)),   # block-diag mask
            pl.BlockSpec((P * NCLASS, NCLASS), lambda i: (0, 0)),  # class col-sum
            pl.BlockSpec((1, NCLASS),         lambda i: (0, 0)),   # fc bias
        ],
        out_specs=pl.BlockSpec((N, NCLASS), lambda i: (0, 0)),
        compiler_params=pltpu.CompilerParams(dimension_semantics=("arbitrary",)),
    )(patches, wtap, cb, gamma, beta, gcat, mask, scol, fcb)


def init_params(key):
    k1, k2, k3, k4, k5, k6 = jax.random.split(key, 6)
    return {
        "conv_w": 0.1 * jax.random.normal(k1, (COUT, CIN, KH, KW), jnp.float32),
        "conv_b": 0.1 * jax.random.normal(k2, (COUT,), jnp.float32),
        "bn_gamma": 1.0 + 0.1 * jax.random.normal(k3, (COUT,), jnp.float32),
        "bn_beta": 0.1 * jax.random.normal(k4, (COUT,), jnp.float32),
        "fc_w": 0.02 * jax.random.normal(k5, (NCLASS, FEAT), jnp.float32),
        "fc_b": 0.1 * jax.random.normal(k6, (NCLASS,), jnp.float32),
    }


if __name__ == "__main__":
    root = jax.random.PRNGKey(0)
    kx, kp = jax.random.split(root)
    x = jax.random.normal(kx, (N, CIN, H, W), jnp.float32)
    params = init_params(kp)

    out = jax.jit(my_network_forward)(x, params)
    out = jax.block_until_ready(out)
    assert out.shape == (N, NCLASS) and out.dtype == jnp.float32
    print("KERNEL_OK")
</pallas_src>

<mosaic_0001>
module attributes {stable_mosaic.version = 11 : i64} {
  func.func @fused_kernel(%arg0: i32, %arg1: memref<768x32xbf16, #tpu.memory_space<vmem>>, %arg2: memref<32x64xbf16, #tpu.memory_space<vmem>>, %arg3: memref<1x64xf32, #tpu.memory_space<vmem>>, %arg4: memref<1x64xf32, #tpu.memory_space<vmem>>, %arg5: memref<1x64xf32, #tpu.memory_space<vmem>>, %arg6: memref<64x240xf32, #tpu.memory_space<vmem>>, %arg7: memref<48x240xf32, #tpu.memory_space<vmem>>, %arg8: memref<240x10xf32, #tpu.memory_space<vmem>>, %arg9: memref<1x10xf32, #tpu.memory_space<vmem>>, %arg10: memref<2x10xf32, #tpu.memory_space<vmem>>) attributes {dimension_semantics = [#tpu.dimension_semantics<arbitrary>], iteration_bounds = array<i64: 1>, scalar_prefetch = 0 : i64, scratch_operands = 0 : i64, tpu.core_type = #tpu.core_type<tc>, window_params = [{pipeline_mode = #tpu.pipeline_mode<synchronous>, transform_indices = @transform_0, window_bounds = array<i64: 768, 32>}, {pipeline_mode = #tpu.pipeline_mode<synchronous>, transform_indices = @transform_1, window_bounds = array<i64: 32, 64>}, {pipeline_mode = #tpu.pipeline_mode<synchronous>, transform_indices = @transform_2, window_bounds = array<i64: 1, 64>}, {pipeline_mode = #tpu.pipeline_mode<synchronous>, transform_indices = @transform_3, window_bounds = array<i64: 1, 64>}, {pipeline_mode = #tpu.pipeline_mode<synchronous>, transform_indices = @transform_4, window_bounds = array<i64: 1, 64>}, {pipeline_mode = #tpu.pipeline_mode<synchronous>, transform_indices = @transform_5, window_bounds = array<i64: 64, 240>}, {pipeline_mode = #tpu.pipeline_mode<synchronous>, transform_indices = @transform_6, window_bounds = array<i64: 48, 240>}, {pipeline_mode = #tpu.pipeline_mode<synchronous>, transform_indices = @transform_7, window_bounds = array<i64: 240, 10>}, {pipeline_mode = #tpu.pipeline_mode<synchronous>, transform_indices = @transform_8, window_bounds = array<i64: 1, 10>}, {pipeline_mode = #tpu.pipeline_mode<synchronous>, transform_indices = @transform_9, window_bounds = array<i64: 2, 10>}]} {
    %c0 = arith.constant 0 : index
    %c0_0 = arith.constant 0 : index
    %0 = vector.load %arg1[%c0, %c0_0] : memref<768x32xbf16, #tpu.memory_space<vmem>>, vector<768x32xbf16>
    %c0_1 = arith.constant 0 : index
    %c0_2 = arith.constant 0 : index
    %1 = vector.load %arg2[%c0_1, %c0_2] : memref<32x64xbf16, #tpu.memory_space<vmem>>, vector<32x64xbf16>
    %cst = arith.constant dense<0.000000e+00> : vector<768x64xf32>
    %2 = tpu.matmul %0, %1, %cst {dimension_numbers = #tpu.dot_dimension_numbers<[1], [0], [0], [1], [0, 0, 1, 1], [], []>} : vector<768x32xbf16>, vector<32x64xbf16>, vector<768x64xf32> -> vector<768x64xf32>
    %c0_3 = arith.constant 0 : index
    %c0_4 = arith.constant 0 : index
    %3 = vector.load %arg3[%c0_3, %c0_4] : memref<1x64xf32, #tpu.memory_space<vmem>>, vector<1x64xf32>
    %4 = vector.broadcast %3 : vector<1x64xf32> to vector<768x64xf32>
    %5 = arith.addf %2, %4 : vector<768x64xf32>
    %cst_5 = arith.constant 1.000000e+00 : f32
    %6 = vector.broadcast %cst_5 : f32 to vector<1x768xf32>
    %cst_6 = arith.constant dense<0.000000e+00> : vector<1x64xf32>
    %7 = tpu.matmul %6, %5, %cst_6 {dimension_numbers = #tpu.dot_dimension_numbers<[1], [0], [0], [1], [0, 0, 1, 1], [], []>} : vector<1x768xf32>, vector<768x64xf32>, vector<1x64xf32> -> vector<1x64xf32>
    %8 = arith.mulf %5, %5 : vector<768x64xf32>
    %cst_7 = arith.constant dense<0.000000e+00> : vector<1x64xf32>
    %9 = tpu.matmul %6, %8, %cst_7 {dimension_numbers = #tpu.dot_dimension_numbers<[1], [0], [0], [1], [0, 0, 1, 1], [], []>} : vector<1x768xf32>, vector<768x64xf32>, vector<1x64xf32> -> vector<1x64xf32>
    %cst_8 = arith.constant 0.00130208337 : f32
    %10 = vector.broadcast %cst_8 : f32 to vector<1x64xf32>
    %11 = arith.mulf %7, %10 : vector<1x64xf32>
    %cst_9 = arith.constant 0.00130208337 : f32
    %12 = vector.broadcast %cst_9 : f32 to vector<1x64xf32>
    %13 = arith.mulf %9, %12 : vector<1x64xf32>
    %14 = arith.mulf %11, %11 : vector<1x64xf32>
    %15 = arith.subf %13, %14 : vector<1x64xf32>
    %16 = vector.broadcast %11 : vector<1x64xf32> to vector<768x64xf32>
    %17 = arith.subf %5, %16 : vector<768x64xf32>
    %cst_10 = arith.constant 9.99999974E-6 : f32
    %18 = vector.broadcast %cst_10 : f32 to vector<1x64xf32>
    %19 = arith.addf %15, %18 : vector<1x64xf32>
    %20 = math.rsqrt %19 : vector<1x64xf32>
    %21 = vector.broadcast %20 : vector<1x64xf32> to vector<768x64xf32>
    %22 = arith.mulf %17, %21 : vector<768x64xf32>
    %c0_11 = arith.constant 0 : index
    %c0_12 = arith.constant 0 : index
    %23 = vector.load %arg4[%c0_11, %c0_12] : memref<1x64xf32, #tpu.memory_space<vmem>>, vector<1x64xf32>
    %24 = vector.broadcast %23 : vector<1x64xf32> to vector<768x64xf32>
    %25 = arith.mulf %22, %24 : vector<768x64xf32>
    %c0_13 = arith.constant 0 : index
    %c0_14 = arith.constant 0 : index
    %26 = vector.load %arg5[%c0_13, %c0_14] : memref<1x64xf32, #tpu.memory_space<vmem>>, vector<1x64xf32>
    %27 = vector.broadcast %26 : vector<1x64xf32> to vector<768x64xf32>
    %28 = arith.addf %25, %27 : vector<768x64xf32>
    %cst_15 = arith.constant 0.000000e+00 : f32
    %29 = vector.broadcast %cst_15 : f32 to vector<768x64xf32>
    %30 = arith.maximumf %28, %29 : vector<768x64xf32>
    %31 = tpu.iota {dimensions = array<i32: 0>} : vector<48x768xi32>
    %32 = tpu.iota {dimensions = array<i32: 1>} : vector<48x768xi32>
    %c16_i32 = arith.constant 16 : i32
    %33 = vector.broadcast %c16_i32 : i32 to vector<48x768xi32>
    %34 = arith.muli %31, %33 : vector<48x768xi32>
    %35 = arith.cmpi sge, %32, %34 : vector<48x768xi32>
    %c16_i32_16 = arith.constant 16 : i32
    %36 = vector.broadcast %c16_i32_16 : i32 to vector<48x768xi32>
    %37 = arith.addi %34, %36 : vector<48x768xi32>
    %38 = arith.cmpi slt, %32, %37 : vector<48x768xi32>
    %39 = arith.andi %35, %38 : vector<48x768xi1>
    %cst_17 = arith.constant 6.250000e-02 : f32
    %cst_18 = arith.constant 0.000000e+00 : f32
    %40 = vector.broadcast %cst_17 : f32 to vector<48x768xf32>
    %41 = vector.broadcast %cst_18 : f32 to vector<48x768xf32>
    %42 = arith.select %39, %40, %41 : vector<48x768xi1>, vector<48x768xf32>
    %cst_19 = arith.constant dense<0.000000e+00> : vector<48x64xf32>
    %43 = tpu.matmul %42, %30, %cst_19 {dimension_numbers = #tpu.dot_dimension_numbers<[1], [0], [0], [1], [0, 0, 1, 1], [], []>} : vector<48x768xf32>, vector<768x64xf32>, vector<48x64xf32> -> vector<48x64xf32>
    %c0_20 = arith.constant 0 : index
    %c0_21 = arith.constant 0 : index
    %44 = vector.load %arg6[%c0_20, %c0_21] : memref<64x240xf32, #tpu.memory_space<vmem>>, vector<64x240xf32>
    %cst_22 = arith.constant dense<0.000000e+00> : vector<48x240xf32>
    %45 = tpu.matmul %43, %44, %cst_22 {dimension_numbers = #tpu.dot_dimension_numbers<[1], [0], [0], [1], [0, 0, 1, 1], [], []>} : vector<48x64xf32>, vector<64x240xf32>, vector<48x240xf32> -> vector<48x240xf32>
    %c0_23 = arith.constant 0 : index
    %c0_24 = arith.constant 0 : index
    %46 = vector.load %arg7[%c0_23, %c0_24] : memref<48x240xf32, #tpu.memory_space<vmem>>, vector<48x240xf32>
    %47 = arith.mulf %45, %46 : vector<48x240xf32>
    %c0_25 = arith.constant 0 : index
    %c0_26 = arith.constant 0 : index
    %48 = vector.load %arg8[%c0_25, %c0_26] : memref<240x10xf32, #tpu.memory_space<vmem>>, vector<240x10xf32>
    %cst_27 = arith.constant dense<0.000000e+00> : vector<48x10xf32>
    %49 = tpu.matmul %47, %48, %cst_27 {dimension_numbers = #tpu.dot_dimension_numbers<[1], [0], [0], [1], [0, 0, 1, 1], [], []>} : vector<48x240xf32>, vector<240x10xf32>, vector<48x10xf32> -> vector<48x10xf32>
    %50 = tpu.iota {dimensions = array<i32: 0>} : vector<2x48xi32>
    %51 = tpu.iota {dimensions = array<i32: 1>} : vector<2x48xi32>
    %c24_i32 = arith.constant 24 : i32
    %52 = vector.broadcast %c24_i32 : i32 to vector<2x48xi32>
    %53 = arith.muli %50, %52 : vector<2x48xi32>
    %54 = arith.cmpi sge, %51, %53 : vector<2x48xi32>
    %c24_i32_28 = arith.constant 24 : i32
    %55 = vector.broadcast %c24_i32_28 : i32 to vector<2x48xi32>
    %56 = arith.addi %53, %55 : vector<2x48xi32>
    %57 = arith.cmpi slt, %51, %56 : vector<2x48xi32>
    %58 = arith.andi %54, %57 : vector<2x48xi1>
    %cst_29 = arith.constant 1.000000e+00 : f32
    %cst_30 = arith.constant 0.000000e+00 : f32
    %59 = vector.broadcast %cst_29 : f32 to vector<2x48xf32>
    %60 = vector.broadcast %cst_30 : f32 to vector<2x48xf32>
    %61 = arith.select %58, %59, %60 : vector<2x48xi1>, vector<2x48xf32>
    %cst_31 = arith.constant dense<0.000000e+00> : vector<2x10xf32>
    %62 = tpu.matmul %61, %49, %cst_31 {dimension_numbers = #tpu.dot_dimension_numbers<[1], [0], [0], [1], [0, 0, 1, 1], [], []>} : vector<2x48xf32>, vector<48x10xf32>, vector<2x10xf32> -> vector<2x10xf32>
    %c0_32 = arith.constant 0 : index
    %c0_33 = arith.constant 0 : index
    %63 = vector.load %arg9[%c0_32, %c0_33] : memref<1x10xf32, #tpu.memory_space<vmem>>, vector<1x10xf32>
    %64 = vector.broadcast %63 : vector<1x10xf32> to vector<2x10xf32>
    %65 = arith.addf %62, %64 : vector<2x10xf32>
    %c0_34 = arith.constant 0 : index
    %c0_35 = arith.constant 0 : index
    %66 = vector.load %arg10[%c0_34, %c0_35] : memref<2x10xf32, #tpu.memory_space<vmem>>, vector<2x10xf32>
    tpu.vector_store %arg10[%c0_34, %c0_35], %65 {strides = array<i32>} : memref<2x10xf32, #tpu.memory_space<vmem>>, vector<2x10xf32>,
    return
  }
  func.func @transform_0(%arg0: i32) -> (i32, i32) {
    %c0_i32 = arith.constant 0 : i32
    %c0_i32_0 = arith.constant 0 : i32
    %c0_i32_1 = arith.constant 0 : i32
    return %c0_i32, %c0_i32_0 : i32, i32
  }
  func.func @transform_1(%arg0: i32) -> (i32, i32) {
    %c0_i32 = arith.constant 0 : i32
    %c0_i32_0 = arith.constant 0 : i32
    %c0_i32_1 = arith.constant 0 : i32
    return %c0_i32, %c0_i32_0 : i32, i32
  }
  func.func @transform_2(%arg0: i32) -> (i32, i32) {
    %c0_i32 = arith.constant 0 : i32
    %c0_i32_0 = arith.constant 0 : i32
    %c0_i32_1 = arith.constant 0 : i32
    return %c0_i32, %c0_i32_0 : i32, i32
  }
  func.func @transform_3(%arg0: i32) -> (i32, i32) {
    %c0_i32 = arith.constant 0 : i32
    %c0_i32_0 = arith.constant 0 : i32
    %c0_i32_1 = arith.constant 0 : i32
    return %c0_i32, %c0_i32_0 : i32, i32
  }
  func.func @transform_4(%arg0: i32) -> (i32, i32) {
    %c0_i32 = arith.constant 0 : i32
    %c0_i32_0 = arith.constant 0 : i32
    %c0_i32_1 = arith.constant 0 : i32
    return %c0_i32, %c0_i32_0 : i32, i32
  }
  func.func @transform_5(%arg0: i32) -> (i32, i32) {
    %c0_i32 = arith.constant 0 : i32
    %c0_i32_0 = arith.constant 0 : i32
    %c0_i32_1 = arith.constant 0 : i32
    return %c0_i32, %c0_i32_0 : i32, i32
  }
  func.func @transform_6(%arg0: i32) -> (i32, i32) {
    %c0_i32 = arith.constant 0 : i32
    %c0_i32_0 = arith.constant 0 : i32
    %c0_i32_1 = arith.constant 0 : i32
    return %c0_i32, %c0_i32_0 : i32, i32
  }
  func.func @transform_7(%arg0: i32) -> (i32, i32) {
    %c0_i32 = arith.constant 0 : i32
    %c0_i32_0 = arith.constant 0 : i32
    %c0_i32_1 = arith.constant 0 : i32
    return %c0_i32, %c0_i32_0 : i32, i32
  }
  func.func @transform_8(%arg0: i32) -> (i32, i32) {
    %c0_i32 = arith.constant 0 : i32
    %c0_i32_0 = arith.constant 0 : i32
    %c0_i32_1 = arith.constant 0 : i32
    return %c0_i32, %c0_i32_0 : i32, i32
  }
  func.func @transform_9(%arg0: i32) -> (i32, i32) {
    %c0_i32 = arith.constant 0 : i32
    %c0_i32_0 = arith.constant 0 : i32
    %c0_i32_1 = arith.constant 0 : i32
    return %c0_i32, %c0_i32_0 : i32, i32
  }
}

</mosaic_0001>

<llo_original>
// kernel: my_network_forward.1
$region0: #{my_network_forward.1}
  #allocation0 [shape = 'u32[]', space=smem, size = 0x4, offset = 0x4, fixed_abs, tag = 'smem constant byte address 0x4 - core index']
  #allocation1 [shape = 'u32[144,128]{1,0:T(1,128)}', space=vmem, size = 0x12000, scoped, tag = 'internal scratch']
  %s0 = inlined_call_operand.vmem [shape: bf16[768,32], index: 0, kind: input, shape index: {}]
  %s1 = inlined_call_operand.vmem [shape: bf16[32,64], index: 1, kind: input, shape index: {}]
  %s2 = inlined_call_operand.vmem [shape: f32[1,64], index: 2, kind: input, shape index: {}]
  %s3 = inlined_call_operand.vmem [shape: f32[1,64], index: 3, kind: input, shape index: {}]
  %s4 = inlined_call_operand.vmem [shape: f32[1,64], index: 4, kind: input, shape index: {}]
  %s5 = inlined_call_operand.vmem [shape: f32[64,240], index: 5, kind: input, shape index: {}]
  %s6 = inlined_call_operand.vmem [shape: f32[48,240], index: 6, kind: input, shape index: {}]
  %s7 = inlined_call_operand.vmem [shape: f32[240,10], index: 7, kind: input, shape index: {}]
  %s8 = inlined_call_operand.vmem [shape: f32[1,10], index: 8, kind: input, shape index: {}]
  %s9 = inlined_call_operand.hbm [shape: f32[2,10], index: 9, kind: output, shape index: {}]
  %s10 = sld [smem:[#allocation0]]
  $region46: #{my_network_forward.1} parent=0
    _
  %s12 = ssub.s32 1, %s10
  %s13 = scalar_select 0, %s12, %s10
  $region1: #{my_network_forward.1} parent=0
    #allocation2 [shape = 'u8[1024]{0}', space=vmem, size = 0x400, scoped, tag = 'output window, operand 0, single buffered']
    #allocation3 [shape = 's32[1]{0}', space=sflag, size = 0x4, scoped, tag = 'scoped memory for my_network_forward.1']
    %14 = vsyncpa [#allocation3], 0
    // Predicated region
    $region2: #{my_network_forward.1} parent=1 // pred_check
      _
    $region3: #{my_network_forward.1} parent=1 // pred_check_branch
      %16 = sbr.rel (0) target = $region5
    $region4: #{my_network_forward.1} parent=1 // pred_region
      _
    $region5: #{my_network_forward.1} parent=1 // pred_fallthru
      _
    // Predicated region
    $region6: #{my_network_forward.1} parent=1 // pred_check
      _
    $region7: #{my_network_forward.1} parent=1 // pred_check_branch
      %18 = sbr.rel (0) target = $region9
    $region8: #{my_network_forward.1} parent=1 // pred_region
      _
    $region9: #{my_network_forward.1} parent=1 // pred_fallthru
      _
    // Predicated region
    $region10: #{my_network_forward.1} parent=1 // pred_check
      _
    $region11: #{my_network_forward.1} parent=1 // pred_check_branch
      %20 = sbr.rel (0) target = $region13
    $region12: #{my_network_forward.1} parent=1 // pred_region
      _
    $region13: #{my_network_forward.1} parent=1 // pred_fallthru
      _
    // Predicated region
    $region14: #{my_network_forward.1} parent=1 // pred_check
      _
    $region15: #{my_network_forward.1} parent=1 // pred_check_branch
      %22 = sbr.rel (0) target = $region17
    $region16: #{my_network_forward.1} parent=1 // pred_region
      _
    $region17: #{my_network_forward.1} parent=1 // pred_fallthru
      _
    // Predicated region
    $region18: #{my_network_forward.1} parent=1 // pred_check
      _
    $region19: #{my_network_forward.1} parent=1 // pred_check_branch
      %24 = sbr.rel (0) target = $region21
    $region20: #{my_network_forward.1} parent=1 // pred_region
      _
    $region21: #{my_network_forward.1} parent=1 // pred_fallthru
      _
    // Predicated region
    $region22: #{my_network_forward.1} parent=1 // pred_check
      _
    $region23: #{my_network_forward.1} parent=1 // pred_check_branch
      %26 = sbr.rel (0) target = $region25
    $region24: #{my_network_forward.1} parent=1 // pred_region
      _
    $region25: #{my_network_forward.1} parent=1 // pred_fallthru
      _
    // Predicated region
    $region26: #{my_network_forward.1} parent=1 // pred_check
      _
    $region27: #{my_network_forward.1} parent=1 // pred_check_branch
      %28 = sbr.rel (0) target = $region29
    $region28: #{my_network_forward.1} parent=1 // pred_region
      _
    $region29: #{my_network_forward.1} parent=1 // pred_fallthru
      _
    // Predicated region
    $region30: #{my_network_forward.1} parent=1 // pred_check
      _
    $region31: #{my_network_forward.1} parent=1 // pred_check_branch
      %30 = sbr.rel (0) target = $region33
    $region32: #{my_network_forward.1} parent=1 // pred_region
      _
    $region33: #{my_network_forward.1} parent=1 // pred_fallthru
      _
    // Predicated region
    $region34: #{my_network_forward.1} parent=1 // pred_check
      _
    $region35: #{my_network_forward.1} parent=1 // pred_check_branch
      %32 = sbr.rel (0) target = $region37
    $region36: #{my_network_forward.1} parent=1 // pred_region
      _
    $region37: #{my_network_forward.1} parent=1 // pred_fallthru
      _
    %v34 = vld [vmem:[%s0] sm:$0xf]
    %v35 = vld [vmem:[%s0 + $0x4] sm:$0xf]
    %v36 = vld [vmem:[%s0 + $0x8] sm:$0xf]
    %v37 = vld [vmem:[%s0 + $0xc] sm:$0xf]
    %v38 = vld [vmem:[%s0 + $0x10] sm:$0xf]
    %v39 = vld [vmem:[%s0 + $0x14] sm:$0xf]
    %v40 = vld [vmem:[%s0 + $0x18] sm:$0xf]
    %v41 = vld [vmem:[%s0 + $0x1c] sm:$0xf]
    %v42 = vld [vmem:[%s0 + $0x20] sm:$0xf]
    %v43 = vld [vmem:[%s0 + $0x24] sm:$0xf]
    %v44 = vld [vmem:[%s0 + $0x28] sm:$0xf]
    %v45 = vld [vmem:[%s0 + $0x2c] sm:$0xf]
    %v46 = vld [vmem:[%s0 + $0x30] sm:$0xf]
    %v47 = vld [vmem:[%s0 + $0x34] sm:$0xf]
    %v48 = vld [vmem:[%s0 + $0x38] sm:$0xf]
    %v49 = vld [vmem:[%s0 + $0x3c] sm:$0xf]
    %v50 = vld [vmem:[%s0 + $0x40] sm:$0xf]
    %v51 = vld [vmem:[%s0 + $0x44] sm:$0xf]
    %v52 = vld [vmem:[%s0 + $0x48] sm:$0xf]
    %v53 = vld [vmem:[%s0 + $0x4c] sm:$0xf]
    %v54 = vld [vmem:[%s0 + $0x50] sm:$0xf]
    %v55 = vld [vmem:[%s0 + $0x54] sm:$0xf]
    %v56 = vld [vmem:[%s0 + $0x58] sm:$0xf]
    %v57 = vld [vmem:[%s0 + $0x5c] sm:$0xf]
    %v58 = vld [vmem:[%s0 + $0x60] sm:$0xf]
    %v59 = vld [vmem:[%s0 + $0x64] sm:$0xf]
    %v60 = vld [vmem:[%s0 + $0x68] sm:$0xf]
    %v61 = vld [vmem:[%s0 + $0x6c] sm:$0xf]
    %v62 = vld [vmem:[%s0 + $0x70] sm:$0xf]
    %v63 = vld [vmem:[%s0 + $0x74] sm:$0xf]
    %v64 = vld [vmem:[%s0 + $0x78] sm:$0xf]
    %v65 = vld [vmem:[%s0 + $0x7c] sm:$0xf]
    %v66 = vld [vmem:[%s0 + $0x80] sm:$0xf]
    %v67 = vld [vmem:[%s0 + $0x84] sm:$0xf]
    %v68 = vld [vmem:[%s0 + $0x88] sm:$0xf]
    %v69 = vld [vmem:[%s0 + $0x8c] sm:$0xf]
    %v70 = vld [vmem:[%s0 + $0x90] sm:$0xf]
    %v71 = vld [vmem:[%s0 + $0x94] sm:$0xf]
    %v72 = vld [vmem:[%s0 + $0x98] sm:$0xf]
    %v73 = vld [vmem:[%s0 + $0x9c] sm:$0xf]
    %v74 = vld [vmem:[%s0 + $0xa0] sm:$0xf]
    %v75 = vld [vmem:[%s0 + $0xa4] sm:$0xf]
    %v76 = vld [vmem:[%s0 + $0xa8] sm:$0xf]
    %v77 = vld [vmem:[%s0 + $0xac] sm:$0xf]
    %v78 = vld [vmem:[%s0 + $0xb0] sm:$0xf]
    %v79 = vld [vmem:[%s0 + $0xb4] sm:$0xf]
    %v80 = vld [vmem:[%s0 + $0xb8] sm:$0xf]
    %v81 = vld [vmem:[%s0 + $0xbc] sm:$0xf]
    %v82 = vld [vmem:[%s0 + $0xc0] sm:$0xf]
    %v83 = vld [vmem:[%s0 + $0xc4] sm:$0xf]
    %v84 = vld [vmem:[%s0 + $0xc8] sm:$0xf]
    %v85 = vld [vmem:[%s0 + $0xcc] sm:$0xf]
    %v86 = vld [vmem:[%s0 + $0xd0] sm:$0xf]
    %v87 = vld [vmem:[%s0 + $0xd4] sm:$0xf]
    %v88 = vld [vmem:[%s0 + $0xd8] sm:$0xf]
    %v89 = vld [vmem:[%s0 + $0xdc] sm:$0xf]
    %v90 = vld [vmem:[%s0 + $0xe0] sm:$0xf]
    %v91 = vld [vmem:[%s0 + $0xe4] sm:$0xf]
    %v92 = vld [vmem:[%s0 + $0xe8] sm:$0xf]
    %v93 = vld [vmem:[%s0 + $0xec] sm:$0xf]
    %v94 = vld [vmem:[%s0 + $0xf0] sm:$0xf]
    %v95 = vld [vmem:[%s0 + $0xf4] sm:$0xf]
    %v96 = vld [vmem:[%s0 + $0xf8] sm:$0xf]
    %v97 = vld [vmem:[%s0 + $0xfc] sm:$0xf]
    %v98 = vld [vmem:[%s0 + $0x100] sm:$0xf]
    %v99 = vld [vmem:[%s0 + $0x104] sm:$0xf]
    %v100 = vld [vmem:[%s0 + $0x108] sm:$0xf]
    %v101 = vld [vmem:[%s0 + $0x10c] sm:$0xf]
    %v102 = vld [vmem:[%s0 + $0x110] sm:$0xf]
    %v103 = vld [vmem:[%s0 + $0x114] sm:$0xf]
    %v104 = vld [vmem:[%s0 + $0x118] sm:$0xf]
    %v105 = vld [vmem:[%s0 + $0x11c] sm:$0xf]
    %v106 = vld [vmem:[%s0 + $0x120] sm:$0xf]
    %v107 = vld [vmem:[%s0 + $0x124] sm:$0xf]
    %v108 = vld [vmem:[%s0 + $0x128] sm:$0xf]
    %v109 = vld [vmem:[%s0 + $0x12c] sm:$0xf]
    %v110 = vld [vmem:[%s0 + $0x130] sm:$0xf]
    %v111 = vld [vmem:[%s0 + $0x134] sm:$0xf]
    %v112 = vld [vmem:[%s0 + $0x138] sm:$0xf]
    %v113 = vld [vmem:[%s0 + $0x13c] sm:$0xf]
    %v114 = vld [vmem:[%s0 + $0x140] sm:$0xf]
    %v115 = vld [vmem:[%s0 + $0x144] sm:$0xf]
    %v116 = vld [vmem:[%s0 + $0x148] sm:$0xf]
    %v117 = vld [vmem:[%s0 + $0x14c] sm:$0xf]
    %v118 = vld [vmem:[%s0 + $0x150] sm:$0xf]
    %v119 = vld [vmem:[%s0 + $0x154] sm:$0xf]
    %v120 = vld [vmem:[%s0 + $0x158] sm:$0xf]
    %v121 = vld [vmem:[%s0 + $0x15c] sm:$0xf]
    %v122 = vld [vmem:[%s0 + $0x160] sm:$0xf]
    %v123 = vld [vmem:[%s0 + $0x164] sm:$0xf]
    %v124 = vld [vmem:[%s0 + $0x168] sm:$0xf]
    %v125 = vld [vmem:[%s0 + $0x16c] sm:$0xf]
    %v126 = vld [vmem:[%s0 + $0x170] sm:$0xf]
    %v127 = vld [vmem:[%s0 + $0x174] sm:$0xf]
    %v128 = vld [vmem:[%s0 + $0x178] sm:$0xf]
    %v129 = vld [vmem:[%s0 + $0x17c] sm:$0xf]
    %v130 = vld [vmem:[%s1] sm:$0xf]
    %v131 = vld [vmem:[%s1 + $0x4] sm:$0xf]
    %v132 = vld [vmem:[%s1 + $0x8] sm:$0xf]
    %v133 = vld [vmem:[%s1 + $0xc] sm:$0xf]
    %v134 = vld [vmem:[%s2] sm:$0x1]
    %v136 = vlaneseq
    %v137 = vshrl.u32 %v136, 7
    %v138 = vsub.s32 0, %v137
    %v139 = vrot.slane %v134, %v138
    %v237 = vunpack.c.l.b16 %v34
    %v238 = vunpack.c.l.b16 %v35
    %v239 = vunpack.c.l.b16 %v36
    %v240 = vunpack.c.l.b16 %v37
    %v241 = vunpack.c.l.b16 %v38
    %v242 = vunpack.c.l.b16 %v39
    %v243 = vunpack.c.l.b16 %v40
    %v244 = vunpack.c.l.b16 %v41
    %v245 = vunpack.c.l.b16 %v42
    %v246 = vunpack.c.l.b16 %v43
    %v247 = vunpack.c.l.b16 %v44
    %v248 = vunpack.c.l.b16 %v45
    %v249 = vunpack.c.l.b16 %v46
    %v250 = vunpack.c.l.b16 %v47
    %v251 = vunpack.c.l.b16 %v48
    %v252 = vunpack.c.l.b16 %v49
    %v253 = vunpack.c.l.b16 %v50
    %v254 = vunpack.c.l.b16 %v51
    %v255 = vunpack.c.l.b16 %v52
    %v256 = vunpack.c.l.b16 %v53
    %v257 = vunpack.c.l.b16 %v54
    %v258 = vunpack.c.l.b16 %v55
    %v259 = vunpack.c.l.b16 %v56
    %v260 = vunpack.c.l.b16 %v57
    %v261 = vunpack.c.l.b16 %v58
    %v262 = vunpack.c.l.b16 %v59
    %v263 = vunpack.c.l.b16 %v60
    %v264 = vunpack.c.l.b16 %v61
    %v265 = vunpack.c.l.b16 %v62
    %v266 = vunpack.c.l.b16 %v63
    %v267 = vunpack.c.l.b16 %v64
    %v268 = vunpack.c.l.b16 %v65
    %v269 = vunpack.c.l.b16 %v66
    %v270 = vunpack.c.l.b16 %v67
    %v271 = vunpack.c.l.b16 %v68
    %v272 = vunpack.c.l.b16 %v69
    %v273 = vunpack.c.l.b16 %v70
    %v274 = vunpack.c.l.b16 %v71
    %v275 = vunpack.c.l.b16 %v72
    %v276 = vunpack.c.l.b16 %v73
    %v277 = vunpack.c.l.b16 %v74
    %v278 = vunpack.c.l.b16 %v75
    %v279 = vunpack.c.l.b16 %v76
    %v280 = vunpack.c.l.b16 %v77
    %v281 = vunpack.c.l.b16 %v78
    %v282 = vunpack.c.l.b16 %v79
    %v283 = vunpack.c.l.b16 %v80
    %v284 = vunpack.c.l.b16 %v81
    %v285 = vunpack.c.l.b16 %v82
    %v286 = vunpack.c.l.b16 %v83
    %v287 = vunpack.c.l.b16 %v84
    %v288 = vunpack.c.l.b16 %v85
    %v289 = vunpack.c.l.b16 %v86
    %v290 = vunpack.c.l.b16 %v87
    %v291 = vunpack.c.l.b16 %v88
    %v292 = vunpack.c.l.b16 %v89
    %v293 = vunpack.c.l.b16 %v90
    %v294 = vunpack.c.l.b16 %v91
    %v295 = vunpack.c.l.b16 %v92
    %v296 = vunpack.c.l.b16 %v93
    %v297 = vunpack.c.l.b16 %v94
    %v298 = vunpack.c.l.b16 %v95
    %v299 = vunpack.c.l.b16 %v96
    %v300 = vunpack.c.l.b16 %v97
    %v301 = vunpack.c.l.b16 %v98
    %v302 = vunpack.c.l.b16 %v99
    %v303 = vunpack.c.l.b16 %v100
    %v304 = vunpack.c.l.b16 %v101
    %v305 = vunpack.c.l.b16 %v102
    %v306 = vunpack.c.l.b16 %v103
    %v307 = vunpack.c.l.b16 %v104
    %v308 = vunpack.c.l.b16 %v105
    %v309 = vunpack.c.l.b16 %v106
    %v310 = vunpack.c.l.b16 %v107
    %v311 = vunpack.c.l.b16 %v108
    %v312 = vunpack.c.l.b16 %v109
    %v313 = vunpack.c.l.b16 %v110
    %v314 = vunpack.c.l.b16 %v111
    %v315 = vunpack.c.l.b16 %v112
    %v316 = vunpack.c.l.b16 %v113
    %v317 = vunpack.c.l.b16 %v114
    %v318 = vunpack.c.l.b16 %v115
    %v319 = vunpack.c.l.b16 %v116
    %v320 = vunpack.c.l.b16 %v117
    %v321 = vunpack.c.l.b16 %v118
    %v322 = vunpack.c.l.b16 %v119
    %v323 = vunpack.c.l.b16 %v120
    %v324 = vunpack.c.l.b16 %v121
    %v325 = vunpack.c.l.b16 %v122
    %v326 = vunpack.c.l.b16 %v123
    %v327 = vunpack.c.l.b16 %v124
    %v328 = vunpack.c.l.b16 %v125
    %v329 = vunpack.c.l.b16 %v126
    %v330 = vunpack.c.l.b16 %v127
    %v331 = vunpack.c.l.b16 %v128
    %v332 = vunpack.c.l.b16 %v129
    %v333 = vpack.c.b16 %v238, %v237
    %v334 = vpack.c.b16 %v240, %v239
    %v335 = vpack.c.b16 %v242, %v241
    %v336 = vpack.c.b16 %v244, %v243
    %v337 = vpack.c.b16 %v246, %v245
    %v338 = vpack.c.b16 %v248, %v247
    %v339 = vpack.c.b16 %v250, %v249
    %v340 = vpack.c.b16 %v252, %v251
    %v341 = vpack.c.b16 %v254, %v253
    %v342 = vpack.c.b16 %v256, %v255
    %v343 = vpack.c.b16 %v258, %v257
    %v344 = vpack.c.b16 %v260, %v259
    %v345 = vpack.c.b16 %v262, %v261
    %v346 = vpack.c.b16 %v264, %v263
    %v347 = vpack.c.b16 %v266, %v265
    %v348 = vpack.c.b16 %v268, %v267
    %v349 = vpack.c.b16 %v270, %v269
    %v350 = vpack.c.b16 %v272, %v271
    %v351 = vpack.c.b16 %v274, %v273
    %v352 = vpack.c.b16 %v276, %v275
    %v353 = vpack.c.b16 %v278, %v277
    %v354 = vpack.c.b16 %v280, %v279
    %v355 = vpack.c.b16 %v282, %v281
    %v356 = vpack.c.b16 %v284, %v283
    %v357 = vpack.c.b16 %v286, %v285
    %v358 = vpack.c.b16 %v288, %v287
    %v359 = vpack.c.b16 %v290, %v289
    %v360 = vpack.c.b16 %v292, %v291
    %v361 = vpack.c.b16 %v294, %v293
    %v362 = vpack.c.b16 %v296, %v295
    %v363 = vpack.c.b16 %v298, %v297
    %v364 = vpack.c.b16 %v300, %v299
    %v365 = vpack.c.b16 %v302, %v301
    %v366 = vpack.c.b16 %v304, %v303
    %v367 = vpack.c.b16 %v306, %v305
    %v368 = vpack.c.b16 %v308, %v307
    %v369 = vpack.c.b16 %v310, %v309
    %v370 = vpack.c.b16 %v312, %v311
    %v371 = vpack.c.b16 %v314, %v313
    %v372 = vpack.c.b16 %v316, %v315
    %v373 = vpack.c.b16 %v318, %v317
    %v374 = vpack.c.b16 %v320, %v319
    %v375 = vpack.c.b16 %v322, %v321
    %v376 = vpack.c.b16 %v324, %v323
    %v377 = vpack.c.b16 %v326, %v325
    %v378 = vpack.c.b16 %v328, %v327
    %v379 = vpack.c.b16 %v330, %v329
    %v380 = vpack.c.b16 %v332, %v331
    %v385 = vunpack.c.l.b16 %v130
    %v386 = vunpack.c.l.b16 %v131
    %v387 = vunpack.c.l.b16 %v132
    %v388 = vunpack.c.l.b16 %v133
    %v389 = vpack.c.b16 %v386, %v385
    %v390 = vpack.c.b16 %v388, %v387
    %vm393 = vcmask 261120
    %v395 = vsel %vm393, %v333, 0
    %v398 = vsel %vm393, %v334, 0
    %v401 = vsel %vm393, %v335, 0
    %v404 = vsel %vm393, %v336, 0
    %v407 = vsel %vm393, %v337, 0
    %v410 = vsel %vm393, %v338, 0
    %v413 = vsel %vm393, %v339, 0
    %v416 = vsel %vm393, %v340, 0
    %v419 = vsel %vm393, %v341, 0
    %v422 = vsel %vm393, %v342, 0
    %v425 = vsel %vm393, %v343, 0
    %v428 = vsel %vm393, %v344, 0
    %v431 = vsel %vm393, %v345, 0
    %v434 = vsel %vm393, %v346, 0
    %v437 = vsel %vm393, %v347, 0
    %v440 = vsel %vm393, %v348, 0
    %v443 = vsel %vm393, %v349, 0
    %v446 = vsel %vm393, %v350, 0
    %v449 = vsel %vm393, %v351, 0
    %v452 = vsel %vm393, %v352, 0
    %v455 = vsel %vm393, %v353, 0
    %v458 = vsel %vm393, %v354, 0
    %v461 = vsel %vm393, %v355, 0
    %v464 = vsel %vm393, %v356, 0
    %v467 = vsel %vm393, %v357, 0
    %v470 = vsel %vm393, %v358, 0
    %v473 = vsel %vm393, %v359, 0
    %v476 = vsel %vm393, %v360, 0
    %v479 = vsel %vm393, %v361, 0
    %v482 = vsel %vm393, %v362, 0
    %v485 = vsel %vm393, %v363, 0
    %v488 = vsel %vm393, %v364, 0
    %v491 = vsel %vm393, %v365, 0
    %v494 = vsel %vm393, %v366, 0
    %v497 = vsel %vm393, %v367, 0
    %v500 = vsel %vm393, %v368, 0
    %v503 = vsel %vm393, %v369, 0
    %v506 = vsel %vm393, %v370, 0
    %v509 = vsel %vm393, %v371, 0
    %v512 = vsel %vm393, %v372, 0
    %v515 = vsel %vm393, %v373, 0
    %v518 = vsel %vm393, %v374, 0
    %v521 = vsel %vm393, %v375, 0
    %v524 = vsel %vm393, %v376, 0
    %v527 = vsel %vm393, %v377, 0
    %v530 = vsel %vm393, %v378, 0
    %v533 = vsel %vm393, %v379, 0
    %v536 = vsel %vm393, %v380, 0
    %538 = vmatprep.subr.bf16.mxu0 0
    %539 = vmatpush1.bf16.msra.mxu0 %v389
    %540 = vmatprep.subr.bf16.mxu0 0
    %541 = vmatpush1.bf16.msra.mxu0 %v390
    %542 = vmatprep.subr.bf16.mxu0 0
    %543 = vmatpush1.bf16.msra.mxu0 0
    %544 = vmatprep.subr.bf16.mxu0 0
    %545 = vmatpush1.bf16.msra.mxu0 0
    %546 = vmatprep.subr.bf16.mxu0 0
    %547 = vmatpush1.bf16.msra.mxu0 0
    %548 = vmatprep.subr.bf16.mxu0 0
    %549 = vmatpush1.bf16.msra.mxu0 0
    %550 = vmatprep.subr.bf16.mxu0 0
    %551 = vmatpush1.bf16.msra.mxu0 0
    %552 = vmatprep.subr.bf16.mxu0 0
    %553 = vmatpush1.bf16.msra.mxu0 0
    %554 = vmatprep.subr.bf16.mxu0 0
    %555 = vmatpush1.bf16.msra.mxu0 0
    %556 = vmatprep.subr.bf16.mxu0 0
    %557 = vmatpush1.bf16.msra.mxu0 0
    %558 = vmatprep.subr.bf16.mxu0 0
    %559 = vmatpush1.bf16.msra.mxu0 0
    %560 = vmatprep.subr.bf16.mxu0 0
    %561 = vmatpush1.bf16.msra.mxu0 0
    %562 = vmatprep.subr.bf16.mxu0 0
    %563 = vmatpush1.bf16.msra.mxu0 0
    %564 = vmatprep.subr.bf16.mxu0 0
    %565 = vmatpush1.bf16.msra.mxu0 0
    %566 = vmatprep.subr.bf16.mxu0 0
    %567 = vmatpush1.bf16.msra.mxu0 0
    %568 = vmatprep.subr.bf16.mxu0 0
    %569 = vmatpush1.bf16.msra.mxu0 0
    %570 = vmatprep.mubr.bf16.mxu0 0
    %571 = vmatmul.mubr.bf16.gmra.mrb[0].mxu0 %v395
    %v572 = vpop.f32.mrb[0].mxu0
    %v573 = vadd.f32 %v139, %v572
    %v574 = vpop.f32.mrb[0].mxu0
    %v575 = vpop.f32.mrb[0].mxu0
    %v576 = vadd.f32 %v139, %v575
    %v577 = vpop.f32.mrb[0].mxu0
    %578 = vmatprep.mubr.bf16.mxu0 0
    %579 = vmatmul.mubr.bf16.gmra.mrb[0].mxu0 %v398
    %v580 = vpop.f32.mrb[0].mxu0
    %v581 = vadd.f32 %v139, %v580
    %v582 = vpop.f32.mrb[0].mxu0
    %v583 = vpop.f32.mrb[0].mxu0
    %v584 = vadd.f32 %v139, %v583
    %v585 = vpop.f32.mrb[0].mxu0
    %586 = vmatprep.mubr.bf16.mxu0 0
    %587 = vmatmul.mubr.bf16.gmra.mrb[0].mxu0 %v401
    %v588 = vpop.f32.mrb[0].mxu0
    %v589 = vadd.f32 %v139, %v588
    %v590 = vpop.f32.mrb[0].mxu0
    %v591 = vpop.f32.mrb[0].mxu0
    %v592 = vadd.f32 %v139, %v591
    %v593 = vpop.f32.mrb[0].mxu0
    %594 = vmatprep.mubr.bf16.mxu0 0
    %595 = vmatmul.mubr.bf16.gmra.mrb[0].mxu0 %v404
    %v596 = vpop.f32.mrb[0].mxu0
    %v597 = vadd.f32 %v139, %v596
    %v598 = vpop.f32.mrb[0].mxu0
    %v599 = vpop.f32.mrb[0].mxu0
    %v600 = vadd.f32 %v139, %v599
    %v601 = vpop.f32.mrb[0].mxu0
    %602 = vmatprep.mubr.bf16.mxu0 0
    %603 = vmatmul.mubr.bf16.gmra.mrb[0].mxu0 %v407
    %v604 = vpop.f32.mrb[0].mxu0
    %v605 = vadd.f32 %v139, %v604
    %v606 = vpop.f32.mrb[0].mxu0
    %v607 = vpop.f32.mrb[0].mxu0
    %v608 = vadd.f32 %v139, %v607
    %v609 = vpop.f32.mrb[0].mxu0
    %610 = vmatprep.mubr.bf16.mxu0 0
    %611 = vmatmul.mubr.bf16.gmra.mrb[0].mxu0 %v410
    %v612 = vpop.f32.mrb[0].mxu0
    %v613 = vadd.f32 %v139, %v612
    %v614 = vpop.f32.mrb[0].mxu0
    %v615 = vpop.f32.mrb[0].mxu0
    %v616 = vadd.f32 %v139, %v615
    %v617 = vpop.f32.mrb[0].mxu0
    %618 = vmatprep.mubr.bf16.mxu0 0
    %619 = vmatmul.mubr.bf16.gmra.mrb[0].mxu0 %v413
    %v620 = vpop.f32.mrb[0].mxu0
    %v621 = vadd.f32 %v139, %v620
    %v622 = vpop.f32.mrb[0].mxu0
    %v623 = vpop.f32.mrb[0].mxu0
    %v624 = vadd.f32 %v139, %v623
    %v625 = vpop.f32.mrb[0].mxu0
    %626 = vmatprep.mubr.bf16.mxu0 0
    %627 = vmatmul.mubr.bf16.gmra.mrb[0].mxu0 %v416
    %v628 = vpop.f32.mrb[0].mxu0
    %v629 = vadd.f32 %v139, %v628
    %v630 = vpop.f32.mrb[0].mxu0
    %v631 = vpop.f32.mrb[0].mxu0
    %v632 = vadd.f32 %v139, %v631
    %v633 = vpop.f32.mrb[0].mxu0
    %634 = vmatprep.mubr.bf16.mxu0 0
    %635 = vmatmul.mubr.bf16.gmra.mrb[0].mxu0 %v419
    %v636 = vpop.f32.mrb[0].mxu0
    %v637 = vadd.f32 %v139, %v636
    %v638 = vpop.f32.mrb[0].mxu0
    %v639 = vpop.f32.mrb[0].mxu0
    %v640 = vadd.f32 %v139, %v639
    %v641 = vpop.f32.mrb[0].mxu0
    %642 = vmatprep.mubr.bf16.mxu0 0
    %643 = vmatmul.mubr.bf16.gmra.mrb[0].mxu0 %v422
    %v644 = vpop.f32.mrb[0].mxu0
    %v645 = vadd.f32 %v139, %v644
    %v646 = vpop.f32.mrb[0].mxu0
    %v647 = vpop.f32.mrb[0].mxu0
    %v648 = vadd.f32 %v139, %v647
    %v649 = vpop.f32.mrb[0].mxu0
    %650 = vmatprep.mubr.bf16.mxu0 0
    %651 = vmatmul.mubr.bf16.gmra.mrb[0].mxu0 %v425
    %v652 = vpop.f32.mrb[0].mxu0
    %v653 = vadd.f32 %v139, %v652
    %v654 = vpop.f32.mrb[0].mxu0
    %v655 = vpop.f32.mrb[0].mxu0
    %v656 = vadd.f32 %v139, %v655
    %v657 = vpop.f32.mrb[0].mxu0
    %658 = vmatprep.mubr.bf16.mxu0 0
    %659 = vmatmul.mubr.bf16.gmra.mrb[0].mxu0 %v428
    %v660 = vpop.f32.mrb[0].mxu0
    %v661 = vadd.f32 %v139, %v660
    %v662 = vpop.f32.mrb[0].mxu0
    %v663 = vpop.f32.mrb[0].mxu0
    %v664 = vadd.f32 %v139, %v663
    %v665 = vpop.f32.mrb[0].mxu0
    %666 = vmatprep.mubr.bf16.mxu0 0
    %667 = vmatmul.mubr.bf16.gmra.mrb[0].mxu0 %v431
    %v668 = vpop.f32.mrb[0].mxu0
    %v669 = vadd.f32 %v139, %v668
    %v670 = vpop.f32.mrb[0].mxu0
    %v671 = vpop.f32.mrb[0].mxu0
    %v672 = vadd.f32 %v139, %v671
    %v673 = vpop.f32.mrb[0].mxu0
    %674 = vmatprep.mubr.bf16.mxu0 0
    %675 = vmatmul.mubr.bf16.gmra.mrb[0].mxu0 %v434
    %v676 = vpop.f32.mrb[0].mxu0
    %v677 = vadd.f32 %v139, %v676
    %v678 = vpop.f32.mrb[0].mxu0
    %v679 = vpop.f32.mrb[0].mxu0
    %v680 = vadd.f32 %v139, %v679
    %v681 = vpop.f32.mrb[0].mxu0
    %682 = vmatprep.mubr.bf16.mxu0 0
    %683 = vmatmul.mubr.bf16.gmra.mrb[0].mxu0 %v437
    %v684 = vpop.f32.mrb[0].mxu0
    %v685 = vadd.f32 %v139, %v684
    %v686 = vpop.f32.mrb[0].mxu0
    %v687 = vpop.f32.mrb[0].mxu0
    %v688 = vadd.f32 %v139, %v687
    %v689 = vpop.f32.mrb[0].mxu0
    %690 = vmatprep.mubr.bf16.mxu0 0
    %691 = vmatmul.mubr.bf16.gmra.mrb[0].mxu0 %v440
    %v692 = vpop.f32.mrb[0].mxu0
    %v693 = vadd.f32 %v139, %v692
    %v694 = vpop.f32.mrb[0].mxu0
    %v695 = vpop.f32.mrb[0].mxu0
    %v696 = vadd.f32 %v139, %v695
    %v697 = vpop.f32.mrb[0].mxu0
    %698 = vmatprep.mubr.bf16.mxu0 0
    %699 = vmatmul.mubr.bf16.gmra.mrb[0].mxu0 %v443
    %v700 = vpop.f32.mrb[0].mxu0
    %v701 = vadd.f32 %v139, %v700
    %v702 = vpop.f32.mrb[0].mxu0
    %v703 = vpop.f32.mrb[0].mxu0
    %v704 = vadd.f32 %v139, %v703
    %v705 = vpop.f32.mrb[0].mxu0
    %706 = vmatprep.mubr.bf16.mxu0 0
    %707 = vmatmul.mubr.bf16.gmra.mrb[0].mxu0 %v446
    %v708 = vpop.f32.mrb[0].mxu0
    %v709 = vadd.f32 %v139, %v708
    %v710 = vpop.f32.mrb[0].mxu0
    %v711 = vpop.f32.mrb[0].mxu0
    %v712 = vadd.f32 %v139, %v711
    %v713 = vpop.f32.mrb[0].mxu0
    %714 = vmatprep.mubr.bf16.mxu0 0
    %715 = vmatmul.mubr.bf16.gmra.mrb[0].mxu0 %v449
    %v716 = vpop.f32.mrb[0].mxu0
    %v717 = vadd.f32 %v139, %v716
    %v718 = vpop.f32.mrb[0].mxu0
    %v719 = vpop.f32.mrb[0].mxu0
    %v720 = vadd.f32 %v139, %v719
    %v721 = vpop.f32.mrb[0].mxu0
    %722 = vmatprep.mubr.bf16.mxu0 0
    %723 = vmatmul.mubr.bf16.gmra.mrb[0].mxu0 %v452
    %v724 = vpop.f32.mrb[0].mxu0
    %v725 = vadd.f32 %v139, %v724
    %v726 = vpop.f32.mrb[0].mxu0
    %v727 = vpop.f32.mrb[0].mxu0
    %v728 = vadd.f32 %v139, %v727
    %v729 = vpop.f32.mrb[0].mxu0
    %730 = vmatprep.mubr.bf16.mxu0 0
    %731 = vmatmul.mubr.bf16.gmra.mrb[0].mxu0 %v455
    %v732 = vpop.f32.mrb[0].mxu0
    %v733 = vadd.f32 %v139, %v732
    %v734 = vpop.f32.mrb[0].mxu0
    %v735 = vpop.f32.mrb[0].mxu0
    %v736 = vadd.f32 %v139, %v735
    %v737 = vpop.f32.mrb[0].mxu0
    %738 = vmatprep.mubr.bf16.mxu0 0
    %739 = vmatmul.mubr.bf16.gmra.mrb[0].mxu0 %v458
    %v740 = vpop.f32.mrb[0].mxu0
    %v741 = vadd.f32 %v139, %v740
    %v742 = vpop.f32.mrb[0].mxu0
    %v743 = vpop.f32.mrb[0].mxu0
    %v744 = vadd.f32 %v139, %v743
    %v745 = vpop.f32.mrb[0].mxu0
    %746 = vmatprep.mubr.bf16.mxu0 0
    %747 = vmatmul.mubr.bf16.gmra.mrb[0].mxu0 %v461
    %v748 = vpop.f32.mrb[0].mxu0
    %v749 = vadd.f32 %v139, %v748
    %v750 = vpop.f32.mrb[0].mxu0
    %v751 = vpop.f32.mrb[0].mxu0
    %v752 = vadd.f32 %v139, %v751
    %v753 = vpop.f32.mrb[0].mxu0
    %754 = vmatprep.mubr.bf16.mxu0 0
    %755 = vmatmul.mubr.bf16.gmra.mrb[0].mxu0 %v464
    %v756 = vpop.f32.mrb[0].mxu0
    %v757 = vadd.f32 %v139, %v756
    %v758 = vpop.f32.mrb[0].mxu0
    %v759 = vpop.f32.mrb[0].mxu0
    %v760 = vadd.f32 %v139, %v759
    %v761 = vpop.f32.mrb[0].mxu0
    %762 = vmatprep.mubr.bf16.mxu0 0
    %763 = vmatmul.mubr.bf16.gmra.mrb[0].mxu0 %v467
    %v764 = vpop.f32.mrb[0].mxu0
    %v765 = vadd.f32 %v139, %v764
    %v766 = vpop.f32.mrb[0].mxu0
    %v767 = vpop.f32.mrb[0].mxu0
    %v768 = vadd.f32 %v139, %v767
    %v769 = vpop.f32.mrb[0].mxu0
    %770 = vmatprep.mubr.bf16.mxu0 0
    %771 = vmatmul.mubr.bf16.gmra.mrb[0].mxu0 %v470
    %v772 = vpop.f32.mrb[0].mxu0
    %v773 = vadd.f32 %v139, %v772
    %v774 = vpop.f32.mrb[0].mxu0
    %v775 = vpop.f32.mrb[0].mxu0
    %v776 = vadd.f32 %v139, %v775
    %v777 = vpop.f32.mrb[0].mxu0
    %778 = vmatprep.mubr.bf16.mxu0 0
    %779 = vmatmul.mubr.bf16.gmra.mrb[0].mxu0 %v473
    %v780 = vpop.f32.mrb[0].mxu0
    %v781 = vadd.f32 %v139, %v780
    %v782 = vpop.f32.mrb[0].mxu0
    %v783 = vpop.f32.mrb[0].mxu0
    %v784 = vadd.f32 %v139, %v783
    %v785 = vpop.f32.mrb[0].mxu0
    %786 = vmatprep.mubr.bf16.mxu0 0
    %787 = vmatmul.mubr.bf16.gmra.mrb[0].mxu0 %v476
    %v788 = vpop.f32.mrb[0].mxu0
    %v789 = vadd.f32 %v139, %v788
    %v790 = vpop.f32.mrb[0].mxu0
    %v791 = vpop.f32.mrb[0].mxu0
    %v792 = vadd.f32 %v139, %v791
    %v793 = vpop.f32.mrb[0].mxu0
    %794 = vmatprep.mubr.bf16.mxu0 0
    %795 = vmatmul.mubr.bf16.gmra.mrb[0].mxu0 %v479
    %v796 = vpop.f32.mrb[0].mxu0
    %v797 = vadd.f32 %v139, %v796
    %v798 = vpop.f32.mrb[0].mxu0
    %v799 = vpop.f32.mrb[0].mxu0
    %v800 = vadd.f32 %v139, %v799
    %v801 = vpop.f32.mrb[0].mxu0
    %802 = vmatprep.mubr.bf16.mxu0 0
    %803 = vmatmul.mubr.bf16.gmra.mrb[0].mxu0 %v482
    %v804 = vpop.f32.mrb[0].mxu0
    %v805 = vadd.f32 %v139, %v804
    %v806 = vpop.f32.mrb[0].mxu0
    %v807 = vpop.f32.mrb[0].mxu0
    %v808 = vadd.f32 %v139, %v807
    %v809 = vpop.f32.mrb[0].mxu0
    %810 = vmatprep.mubr.bf16.mxu0 0
    %811 = vmatmul.mubr.bf16.gmra.mrb[0].mxu0 %v485
    %v812 = vpop.f32.mrb[0].mxu0
    %v813 = vadd.f32 %v139, %v812
    %v814 = vpop.f32.mrb[0].mxu0
    %v815 = vpop.f32.mrb[0].mxu0
    %v816 = vadd.f32 %v139, %v815
    %v817 = vpop.f32.mrb[0].mxu0
    %818 = vmatprep.mubr.bf16.mxu0 0
    %819 = vmatmul.mubr.bf16.gmra.mrb[0].mxu0 %v488
    %v820 = vpop.f32.mrb[0].mxu0
    %v821 = vadd.f32 %v139, %v820
    %v822 = vpop.f32.mrb[0].mxu0
    %v823 = vpop.f32.mrb[0].mxu0
    %v824 = vadd.f32 %v139, %v823
    %v825 = vpop.f32.mrb[0].mxu0
    %826 = vmatprep.mubr.bf16.mxu0 0
    %827 = vmatmul.mubr.bf16.gmra.mrb[0].mxu0 %v491
    %v828 = vpop.f32.mrb[0].mxu0
    %v829 = vadd.f32 %v139, %v828
    %v830 = vpop.f32.mrb[0].mxu0
    %v831 = vpop.f32.mrb[0].mxu0
    %v832 = vadd.f32 %v139, %v831
    %v833 = vpop.f32.mrb[0].mxu0
    %834 = vmatprep.mubr.bf16.mxu0 0
    %835 = vmatmul.mubr.bf16.gmra.mrb[0].mxu0 %v494
    %v836 = vpop.f32.mrb[0].mxu0
    %v837 = vadd.f32 %v139, %v836
    %v838 = vpop.f32.mrb[0].mxu0
    %v839 = vpop.f32.mrb[0].mxu0
    %v840 = vadd.f32 %v139, %v839
    %v841 = vpop.f32.mrb[0].mxu0
    %842 = vmatprep.mubr.bf16.mxu0 0
    %843 = vmatmul.mubr.bf16.gmra.mrb[0].mxu0 %v497
    %v844 = vpop.f32.mrb[0].mxu0
    %v845 = vadd.f32 %v139, %v844
    %v846 = vpop.f32.mrb[0].mxu0
    %v847 = vpop.f32.mrb[0].mxu0
    %v848 = vadd.f32 %v139, %v847
    %v849 = vpop.f32.mrb[0].mxu0
    %850 = vmatprep.mubr.bf16.mxu0 0
    %851 = vmatmul.mubr.bf16.gmra.mrb[0].mxu0 %v500
    %v852 = vpop.f32.mrb[0].mxu0
    %v853 = vadd.f32 %v139, %v852
    %v854 = vpop.f32.mrb[0].mxu0
    %v855 = vpop.f32.mrb[0].mxu0
    %v856 = vadd.f32 %v139, %v855
    %v857 = vpop.f32.mrb[0].mxu0
    %858 = vmatprep.mubr.bf16.mxu0 0
    %859 = vmatmul.mubr.bf16.gmra.mrb[0].mxu0 %v503
    %v860 = vpop.f32.mrb[0].mxu0
    %v861 = vadd.f32 %v139, %v860
    %v862 = vpop.f32.mrb[0].mxu0
    %v863 = vpop.f32.mrb[0].mxu0
    %v864 = vadd.f32 %v139, %v863
    %v865 = vpop.f32.mrb[0].mxu0
    %866 = vmatprep.mubr.bf16.mxu0 0
    %867 = vmatmul.mubr.bf16.gmra.mrb[0].mxu0 %v506
    %v868 = vpop.f32.mrb[0].mxu0
    %v869 = vadd.f32 %v139, %v868
    %v870 = vpop.f32.mrb[0].mxu0
    %v871 = vpop.f32.mrb[0].mxu0
    %v872 = vadd.f32 %v139, %v871
    %v873 = vpop.f32.mrb[0].mxu0
    %874 = vmatprep.mubr.bf16.mxu0 0
    %875 = vmatmul.mubr.bf16.gmra.mrb[0].mxu0 %v509
    %v876 = vpop.f32.mrb[0].mxu0
    %v877 = vadd.f32 %v139, %v876
    %v878 = vpop.f32.mrb[0].mxu0
    %v879 = vpop.f32.mrb[0].mxu0
    %v880 = vadd.f32 %v139, %v879
    %v881 = vpop.f32.mrb[0].mxu0
    %882 = vmatprep.mubr.bf16.mxu0 0
    %883 = vmatmul.mubr.bf16.gmra.mrb[0].mxu0 %v512
    %v884 = vpop.f32.mrb[0].mxu0
    %v885 = vadd.f32 %v139, %v884
    %v886 = vpop.f32.mrb[0].mxu0
    %v887 = vpop.f32.mrb[0].mxu0
    %v888 = vadd.f32 %v139, %v887
    %v889 = vpop.f32.mrb[0].mxu0
    %890 = vmatprep.mubr.bf16.mxu0 0
    %891 = vmatmul.mubr.bf16.gmra.mrb[0].mxu0 %v515
    %v892 = vpop.f32.mrb[0].mxu0
    %v893 = vadd.f32 %v139, %v892
    %v894 = vpop.f32.mrb[0].mxu0
    %v895 = vpop.f32.mrb[0].mxu0
    %v896 = vadd.f32 %v139, %v895
    %v897 = vpop.f32.mrb[0].mxu0
    %898 = vmatprep.mubr.bf16.mxu0 0
    %899 = vmatmul.mubr.bf16.gmra.mrb[0].mxu0 %v518
    %v900 = vpop.f32.mrb[0].mxu0
    %v901 = vadd.f32 %v139, %v900
    %v902 = vpop.f32.mrb[0].mxu0
    %v903 = vpop.f32.mrb[0].mxu0
    %v904 = vadd.f32 %v139, %v903
    %v905 = vpop.f32.mrb[0].mxu0
    %906 = vmatprep.mubr.bf16.mxu0 0
    %907 = vmatmul.mubr.bf16.gmra.mrb[0].mxu0 %v521
    %v908 = vpop.f32.mrb[0].mxu0
    %v909 = vadd.f32 %v139, %v908
    %v910 = vpop.f32.mrb[0].mxu0
    %v911 = vpop.f32.mrb[0].mxu0
    %v912 = vadd.f32 %v139, %v911
    %v913 = vpop.f32.mrb[0].mxu0
    %914 = vmatprep.mubr.bf16.mxu0 0
    %915 = vmatmul.mubr.bf16.gmra.mrb[0].mxu0 %v524
    %v916 = vpop.f32.mrb[0].mxu0
    %v917 = vadd.f32 %v139, %v916
    %v918 = vpop.f32.mrb[0].mxu0
    %v919 = vpop.f32.mrb[0].mxu0
    %v920 = vadd.f32 %v139, %v919
    %v921 = vpop.f32.mrb[0].mxu0
    %922 = vmatprep.mubr.bf16.mxu0 0
    %923 = vmatmul.mubr.bf16.gmra.mrb[0].mxu0 %v527
    %v924 = vpop.f32.mrb[0].mxu0
    %v925 = vadd.f32 %v139, %v924
    %v926 = vpop.f32.mrb[0].mxu0
    %v927 = vpop.f32.mrb[0].mxu0
    %v928 = vadd.f32 %v139, %v927
    %v929 = vpop.f32.mrb[0].mxu0
    %930 = vmatprep.mubr.bf16.mxu0 0
    %931 = vmatmul.mubr.bf16.gmra.mrb[0].mxu0 %v530
    %v932 = vpop.f32.mrb[0].mxu0
    %v933 = vadd.f32 %v139, %v932
    %v934 = vpop.f32.mrb[0].mxu0
    %v935 = vpop.f32.mrb[0].mxu0
    %v936 = vadd.f32 %v139, %v935
    %v937 = vpop.f32.mrb[0].mxu0
    %938 = vmatprep.mubr.bf16.mxu0 0
    %939 = vmatmul.mubr.bf16.gmra.mrb[0].mxu0 %v533
    %v940 = vpop.f32.mrb[0].mxu0
    %v941 = vadd.f32 %v139, %v940
    %v942 = vpop.f32.mrb[0].mxu0
    %v943 = vpop.f32.mrb[0].mxu0
    %v944 = vadd.f32 %v139, %v943
    %v945 = vpop.f32.mrb[0].mxu0
    %946 = vmatprep.mubr.bf16.mxu0 0
    %947 = vmatmul.mubr.bf16.gmra.mrb[0].mxu0 %v536
    %v948 = vpop.f32.mrb[0].mxu0
    %v949 = vadd.f32 %v139, %v948
    %v950 = vpop.f32.mrb[0].mxu0
    %v951 = vpop.f32.mrb[0].mxu0
    %v952 = vadd.f32 %v139, %v951
    %v953 = vpop.f32.mrb[0].mxu0
    %954 = vdwg.mxu0
    %955 = vmatprep.subr.mxu0 0.0
    %956 = vmatpush1.msra.mxu0 %v573
    %957 = vmatprep.subr.mxu0 0.0
    %958 = vmatpush1.msra.mxu0 %v576
    %959 = vmatprep.subr.mxu0 0.0
    %960 = vmatpush1.msra.mxu0 %v581
    %961 = vmatprep.subr.mxu0 0.0
    %962 = vmatpush1.msra.mxu0 %v584
    %963 = vmatprep.subr.mxu0 0.0
    %964 = vmatpush1.msra.mxu0 %v589
    %965 = vmatprep.subr.mxu0 0.0
    %966 = vmatpush1.msra.mxu0 %v592
    %967 = vmatprep.subr.mxu0 0.0
    %968 = vmatpush1.msra.mxu0 %v597
    %969 = vmatprep.subr.mxu0 0.0
    %970 = vmatpush1.msra.mxu0 %v600
    %971 = vmatprep.subr.mxu0 0.0
    %972 = vmatpush1.msra.mxu0 %v605
    %973 = vmatprep.subr.mxu0 0.0
    %974 = vmatpush1.msra.mxu0 %v608
    %975 = vmatprep.subr.mxu0 0.0
    %976 = vmatpush1.msra.mxu0 %v613
    %977 = vmatprep.subr.mxu0 0.0
    %978 = vmatpush1.msra.mxu0 %v616
    %979 = vmatprep.subr.mxu0 0.0
    %980 = vmatpush1.msra.mxu0 %v621
    %981 = vmatprep.subr.mxu0 0.0
    %982 = vmatpush1.msra.mxu0 %v624
    %983 = vmatprep.subr.mxu0 0.0
    %984 = vmatpush1.msra.mxu0 %v629
    %985 = vmatprep.subr.mxu0 0.0
    %986 = vmatpush1.msra.mxu0 %v632
    %987 = vmatprep.subr.mxu0 0.0
    %988 = vmatpush1.msra.mxu0 %v637
    %989 = vmatprep.subr.mxu0 0.0
    %990 = vmatpush1.msra.mxu0 %v640
    %991 = vmatprep.subr.mxu0 0.0
    %992 = vmatpush1.msra.mxu0 %v645
    %993 = vmatprep.subr.mxu0 0.0
    %994 = vmatpush1.msra.mxu0 %v648
    %995 = vmatprep.subr.mxu0 0.0
    %996 = vmatpush1.msra.mxu0 %v653
    %997 = vmatprep.subr.mxu0 0.0
    %998 = vmatpush1.msra.mxu0 %v656
    %999 = vmatprep.subr.mxu0 0.0
    %1000 = vmatpush1.msra.mxu0 %v661
    %1001 = vmatprep.subr.mxu0 0.0
    %1002 = vmatpush1.msra.mxu0 %v664
    %1003 = vmatprep.subr.mxu0 0.0
    %1004 = vmatpush1.msra.mxu0 %v669
    %1005 = vmatprep.subr.mxu0 0.0
    %1006 = vmatpush1.msra.mxu0 %v672
    %1007 = vmatprep.subr.mxu0 0.0
    %1008 = vmatpush1.msra.mxu0 %v677
    %1009 = vmatprep.subr.mxu0 0.0
    %1010 = vmatpush1.msra.mxu0 %v680
    %1011 = vmatprep.subr.mxu0 0.0
    %1012 = vmatpush1.msra.mxu0 %v685
    %1013 = vmatprep.subr.mxu0 0.0
    %1014 = vmatpush1.msra.mxu0 %v688
    %1015 = vmatprep.subr.mxu0 0.0
    %1016 = vmatpush1.msra.mxu0 %v693
    %1017 = vmatprep.subr.mxu0 0.0
    %1018 = vmatpush1.msra.mxu0 %v696
    %1019 = vmatprep.mubr.f32.mxu0 1.0
    %1020 = vmatmul.mubr.f32.gmra.mrb[0].mxu0 1.0
    %v1021 = vpop.f32.mrb[0].mxu0
    %v1022 = vadd.f32 0.0, %v1021
    %v1023 = vpop.f32.mrb[0].mxu0
    %1024 = vdwg.mxu0
    %1025 = vmatprep.subr.mxu0 0.0
    %1026 = vmatpush1.msra.mxu0 %v701
    %1027 = vmatprep.subr.mxu0 0.0
    %1028 = vmatpush1.msra.mxu0 %v704
    %1029 = vmatprep.subr.mxu0 0.0
    %1030 = vmatpush1.msra.mxu0 %v709
    %1031 = vmatprep.subr.mxu0 0.0
    %1032 = vmatpush1.msra.mxu0 %v712
    %1033 = vmatprep.subr.mxu0 0.0
    %1034 = vmatpush1.msra.mxu0 %v717
    %1035 = vmatprep.subr.mxu0 0.0
    %1036 = vmatpush1.msra.mxu0 %v720
    %1037 = vmatprep.subr.mxu0 0.0
    %1038 = vmatpush1.msra.mxu0 %v725
    %1039 = vmatprep.subr.mxu0 0.0
    %1040 = vmatpush1.msra.mxu0 %v728
    %1041 = vmatprep.subr.mxu0 0.0
    %1042 = vmatpush1.msra.mxu0 %v733
    %1043 = vmatprep.subr.mxu0 0.0
    %1044 = vmatpush1.msra.mxu0 %v736
    %1045 = vmatprep.subr.mxu0 0.0
    %1046 = vmatpush1.msra.mxu0 %v741
    %1047 = vmatprep.subr.mxu0 0.0
    %1048 = vmatpush1.msra.mxu0 %v744
    %1049 = vmatprep.subr.mxu0 0.0
    %1050 = vmatpush1.msra.mxu0 %v749
    %1051 = vmatprep.subr.mxu0 0.0
    %1052 = vmatpush1.msra.mxu0 %v752
    %1053 = vmatprep.subr.mxu0 0.0
    %1054 = vmatpush1.msra.mxu0 %v757
    %1055 = vmatprep.subr.mxu0 0.0
    %1056 = vmatpush1.msra.mxu0 %v760
    %1057 = vmatprep.subr.mxu0 0.0
    %1058 = vmatpush1.msra.mxu0 %v765
    %1059 = vmatprep.subr.mxu0 0.0
    %1060 = vmatpush1.msra.mxu0 %v768
    %1061 = vmatprep.subr.mxu0 0.0
    %1062 = vmatpush1.msra.mxu0 %v773
    %1063 = vmatprep.subr.mxu0 0.0
    %1064 = vmatpush1.msra.mxu0 %v776
    %1065 = vmatprep.subr.mxu0 0.0
    %1066 = vmatpush1.msra.mxu0 %v781
    %1067 = vmatprep.subr.mxu0 0.0
    %1068 = vmatpush1.msra.mxu0 %v784
    %1069 = vmatprep.subr.mxu0 0.0
    %1070 = vmatpush1.msra.mxu0 %v789
    %1071 = vmatprep.subr.mxu0 0.0
    %1072 = vmatpush1.msra.mxu0 %v792
    %1073 = vmatprep.subr.mxu0 0.0
    %1074 = vmatpush1.msra.mxu0 %v797
    %1075 = vmatprep.subr.mxu0 0.0
    %1076 = vmatpush1.msra.mxu0 %v800
    %1077 = vmatprep.subr.mxu0 0.0
    %1078 = vmatpush1.msra.mxu0 %v805
    %1079 = vmatprep.subr.mxu0 0.0
    %1080 = vmatpush1.msra.mxu0 %v808
    %1081 = vmatprep.subr.mxu0 0.0
    %1082 = vmatpush1.msra.mxu0 %v813
    %1083 = vmatprep.subr.mxu0 0.0
    %1084 = vmatpush1.msra.mxu0 %v816
    %1085 = vmatprep.subr.mxu0 0.0
    %1086 = vmatpush1.msra.mxu0 %v821
    %1087 = vmatprep.subr.mxu0 0.0
    %1088 = vmatpush1.msra.mxu0 %v824
    %1089 = vmatprep.mubr.f32.mxu0 1.0
    %1090 = vmatmul.mubr.f32.gmra.mrb[0].mxu0 1.0
    %v1091 = vpop.f32.mrb[0].mxu0
    %v1092 = vadd.f32 %v1022, %v1091
    %v1093 = vpop.f32.mrb[0].mxu0
    %1094 = vdwg.mxu0
    %1095 = vmatprep.subr.mxu0 0.0
    %1096 = vmatpush1.msra.mxu0 %v829
    %1097 = vmatprep.subr.mxu0 0.0
    %1098 = vmatpush1.msra.mxu0 %v832
    %1099 = vmatprep.subr.mxu0 0.0
    %1100 = vmatpush1.msra.mxu0 %v837
    %1101 = vmatprep.subr.mxu0 0.0
    %1102 = vmatpush1.msra.mxu0 %v840
    %1103 = vmatprep.subr.mxu0 0.0
    %1104 = vmatpush1.msra.mxu0 %v845
    %1105 = vmatprep.subr.mxu0 0.0
    %1106 = vmatpush1.msra.mxu0 %v848
    %1107 = vmatprep.subr.mxu0 0.0
    %1108 = vmatpush1.msra.mxu0 %v853
    %1109 = vmatprep.subr.mxu0 0.0
    %1110 = vmatpush1.msra.mxu0 %v856
    %1111 = vmatprep.subr.mxu0 0.0
    %1112 = vmatpush1.msra.mxu0 %v861
    %1113 = vmatprep.subr.mxu0 0.0
    %1114 = vmatpush1.msra.mxu0 %v864
    %1115 = vmatprep.subr.mxu0 0.0
    %1116 = vmatpush1.msra.mxu0 %v869
    %1117 = vmatprep.subr.mxu0 0.0
    %1118 = vmatpush1.msra.mxu0 %v872
    %1119 = vmatprep.subr.mxu0 0.0
    %1120 = vmatpush1.msra.mxu0 %v877
    %1121 = vmatprep.subr.mxu0 0.0
    %1122 = vmatpush1.msra.mxu0 %v880
    %1123 = vmatprep.subr.mxu0 0.0
    %1124 = vmatpush1.msra.mxu0 %v885
    %1125 = vmatprep.subr.mxu0 0.0
    %1126 = vmatpush1.msra.mxu0 %v888
    %1127 = vmatprep.subr.mxu0 0.0
    %1128 = vmatpush1.msra.mxu0 %v893
    %1129 = vmatprep.subr.mxu0 0.0
    %1130 = vmatpush1.msra.mxu0 %v896
    %1131 = vmatprep.subr.mxu0 0.0
    %1132 = vmatpush1.msra.mxu0 %v901
    %1133 = vmatprep.subr.mxu0 0.0
    %1134 = vmatpush1.msra.mxu0 %v904
    %1135 = vmatprep.subr.mxu0 0.0
    %1136 = vmatpush1.msra.mxu0 %v909
    %1137 = vmatprep.subr.mxu0 0.0
    %1138 = vmatpush1.msra.mxu0 %v912
    %1139 = vmatprep.subr.mxu0 0.0
    %1140 = vmatpush1.msra.mxu0 %v917
    %1141 = vmatprep.subr.mxu0 0.0
    %1142 = vmatpush1.msra.mxu0 %v920
    %1143 = vmatprep.subr.mxu0 0.0
    %1144 = vmatpush1.msra.mxu0 %v925
    %1145 = vmatprep.subr.mxu0 0.0
    %1146 = vmatpush1.msra.mxu0 %v928
    %1147 = vmatprep.subr.mxu0 0.0
    %1148 = vmatpush1.msra.mxu0 %v933
    %1149 = vmatprep.subr.mxu0 0.0
    %1150 = vmatpush1.msra.mxu0 %v936
    %1151 = vmatprep.subr.mxu0 0.0
    %1152 = vmatpush1.msra.mxu0 %v941
    %1153 = vmatprep.subr.mxu0 0.0
    %1154 = vmatpush1.msra.mxu0 %v944
    %1155 = vmatprep.subr.mxu0 0.0
    %1156 = vmatpush1.msra.mxu0 %v949
    %1157 = vmatprep.subr.mxu0 0.0
    %1158 = vmatpush1.msra.mxu0 %v952
    %1159 = vmatprep.mubr.f32.mxu0 1.0
    %1160 = vmatmul.mubr.f32.gmra.mrb[0].mxu0 1.0
    %v1161 = vpop.f32.mrb[0].mxu0
    %v1162 = vadd.f32 %v1092, %v1161
    %v1163 = vpop.f32.mrb[0].mxu0
    %1164 = vdwg.mxu0
    %v1165 = vmul.f32 %v573, %v573
    %v1166 = vmul.f32 %v576, %v576
    %v1167 = vmul.f32 %v581, %v581
    %v1168 = vmul.f32 %v584, %v584
    %v1169 = vmul.f32 %v589, %v589
    %v1170 = vmul.f32 %v592, %v592
    %v1171 = vmul.f32 %v597, %v597
    %v1172 = vmul.f32 %v600, %v600
    %v1173 = vmul.f32 %v605, %v605
    %v1174 = vmul.f32 %v608, %v608
    %v1175 = vmul.f32 %v613, %v613
    %v1176 = vmul.f32 %v616, %v616
    %v1177 = vmul.f32 %v621, %v621
    %v1178 = vmul.f32 %v624, %v624
    %v1179 = vmul.f32 %v629, %v629
    %v1180 = vmul.f32 %v632, %v632
    %v1181 = vmul.f32 %v637, %v637
    %v1182 = vmul.f32 %v640, %v640
    %v1183 = vmul.f32 %v645, %v645
    %v1184 = vmul.f32 %v648, %v648
    %v1185 = vmul.f32 %v653, %v653
    %v1186 = vmul.f32 %v656, %v656
    %v1187 = vmul.f32 %v661, %v661
    %v1188 = vmul.f32 %v664, %v664
    %v1189 = vmul.f32 %v669, %v669
    %v1190 = vmul.f32 %v672, %v672
    %v1191 = vmul.f32 %v677, %v677
    %v1192 = vmul.f32 %v680, %v680
    %v1193 = vmul.f32 %v685, %v685
    %v1194 = vmul.f32 %v688, %v688
    %v1195 = vmul.f32 %v693, %v693
    %v1196 = vmul.f32 %v696, %v696
    %v1197 = vmul.f32 %v701, %v701
    %v1198 = vmul.f32 %v704, %v704
    %v1199 = vmul.f32 %v709, %v709
    %v1200 = vmul.f32 %v712, %v712
    %v1201 = vmul.f32 %v717, %v717
    %v1202 = vmul.f32 %v720, %v720
    %v1203 = vmul.f32 %v725, %v725
    %v1204 = vmul.f32 %v728, %v728
    %v1205 = vmul.f32 %v733, %v733
    %v1206 = vmul.f32 %v736, %v736
    %v1207 = vmul.f32 %v741, %v741
    %v1208 = vmul.f32 %v744, %v744
    %v1209 = vmul.f32 %v749, %v749
    %v1210 = vmul.f32 %v752, %v752
    %v1211 = vmul.f32 %v757, %v757
    %v1212 = vmul.f32 %v760, %v760
    %v1213 = vmul.f32 %v765, %v765
    %v1214 = vmul.f32 %v768, %v768
    %v1215 = vmul.f32 %v773, %v773
    %v1216 = vmul.f32 %v776, %v776
    %v1217 = vmul.f32 %v781, %v781
    %v1218 = vmul.f32 %v784, %v784
    %v1219 = vmul.f32 %v789, %v789
    %v1220 = vmul.f32 %v792, %v792
    %v1221 = vmul.f32 %v797, %v797
    %v1222 = vmul.f32 %v800, %v800
    %v1223 = vmul.f32 %v805, %v805
    %v1224 = vmul.f32 %v808, %v808
    %v1225 = vmul.f32 %v813, %v813
    %v1226 = vmul.f32 %v816, %v816
    %v1227 = vmul.f32 %v821, %v821
    %v1228 = vmul.f32 %v824, %v824
    %v1229 = vmul.f32 %v829, %v829
    %v1230 = vmul.f32 %v832, %v832
    %v1231 = vmul.f32 %v837, %v837
    %v1232 = vmul.f32 %v840, %v840
    %v1233 = vmul.f32 %v845, %v845
    %v1234 = vmul.f32 %v848, %v848
    %v1235 = vmul.f32 %v853, %v853
    %v1236 = vmul.f32 %v856, %v856
    %v1237 = vmul.f32 %v861, %v861
    %v1238 = vmul.f32 %v864, %v864
    %v1239 = vmul.f32 %v869, %v869
    %v1240 = vmul.f32 %v872, %v872
    %v1241 = vmul.f32 %v877, %v877
    %v1242 = vmul.f32 %v880, %v880
    %v1243 = vmul.f32 %v885, %v885
    %v1244 = vmul.f32 %v888, %v888
    %v1245 = vmul.f32 %v893, %v893
    %v1246 = vmul.f32 %v896, %v896
    %v1247 = vmul.f32 %v901, %v901
    %v1248 = vmul.f32 %v904, %v904
    %v1249 = vmul.f32 %v909, %v909
    %v1250 = vmul.f32 %v912, %v912
    %v1251 = vmul.f32 %v917, %v917
    %v1252 = vmul.f32 %v920, %v920
    %v1253 = vmul.f32 %v925, %v925
    %v1254 = vmul.f32 %v928, %v928
    %v1255 = vmul.f32 %v933, %v933
    %v1256 = vmul.f32 %v936, %v936
    %v1257 = vmul.f32 %v941, %v941
    %v1258 = vmul.f32 %v944, %v944
    %v1259 = vmul.f32 %v949, %v949
    %v1260 = vmul.f32 %v952, %v952
    %1261 = vmatprep.subr.mxu0 0.0
    %1262 = vmatpush1.msra.mxu0 %v1165
    %1263 = vmatprep.subr.mxu0 0.0
    %1264 = vmatpush1.msra.mxu0 %v1166
    %1265 = vmatprep.subr.mxu0 0.0
    %1266 = vmatpush1.msra.mxu0 %v1167
    %1267 = vmatprep.subr.mxu0 0.0
    %1268 = vmatpush1.msra.mxu0 %v1168
    %1269 = vmatprep.subr.mxu0 0.0
    %1270 = vmatpush1.msra.mxu0 %v1169
    %1271 = vmatprep.subr.mxu0 0.0
    %1272 = vmatpush1.msra.mxu0 %v1170
    %1273 = vmatprep.subr.mxu0 0.0
    %1274 = vmatpush1.msra.mxu0 %v1171
    %1275 = vmatprep.subr.mxu0 0.0
    %1276 = vmatpush1.msra.mxu0 %v1172
    %1277 = vmatprep.subr.mxu0 0.0
    %1278 = vmatpush1.msra.mxu0 %v1173
    %1279 = vmatprep.subr.mxu0 0.0
    %1280 = vmatpush1.msra.mxu0 %v1174
    %1281 = vmatprep.subr.mxu0 0.0
    %1282 = vmatpush1.msra.mxu0 %v1175
    %1283 = vmatprep.subr.mxu0 0.0
    %1284 = vmatpush1.msra.mxu0 %v1176
    %1285 = vmatprep.subr.mxu0 0.0
    %1286 = vmatpush1.msra.mxu0 %v1177
    %1287 = vmatprep.subr.mxu0 0.0
    %1288 = vmatpush1.msra.mxu0 %v1178
    %1289 = vmatprep.subr.mxu0 0.0
    %1290 = vmatpush1.msra.mxu0 %v1179
    %1291 = vmatprep.subr.mxu0 0.0
    %1292 = vmatpush1.msra.mxu0 %v1180
    %1293 = vmatprep.subr.mxu0 0.0
    %1294 = vmatpush1.msra.mxu0 %v1181
    %1295 = vmatprep.subr.mxu0 0.0
    %1296 = vmatpush1.msra.mxu0 %v1182
    %1297 = vmatprep.subr.mxu0 0.0
    %1298 = vmatpush1.msra.mxu0 %v1183
    %1299 = vmatprep.subr.mxu0 0.0
    %1300 = vmatpush1.msra.mxu0 %v1184
    %1301 = vmatprep.subr.mxu0 0.0
    %1302 = vmatpush1.msra.mxu0 %v1185
    %1303 = vmatprep.subr.mxu0 0.0
    %1304 = vmatpush1.msra.mxu0 %v1186
    %1305 = vmatprep.subr.mxu0 0.0
    %1306 = vmatpush1.msra.mxu0 %v1187
    %1307 = vmatprep.subr.mxu0 0.0
    %1308 = vmatpush1.msra.mxu0 %v1188
    %1309 = vmatprep.subr.mxu0 0.0
    %1310 = vmatpush1.msra.mxu0 %v1189
    %1311 = vmatprep.subr.mxu0 0.0
    %1312 = vmatpush1.msra.mxu0 %v1190
    %1313 = vmatprep.subr.mxu0 0.0
    %1314 = vmatpush1.msra.mxu0 %v1191
    %1315 = vmatprep.subr.mxu0 0.0
    %1316 = vmatpush1.msra.mxu0 %v1192
    %1317 = vmatprep.subr.mxu0 0.0
    %1318 = vmatpush1.msra.mxu0 %v1193
    %1319 = vmatprep.subr.mxu0 0.0
    %1320 = vmatpush1.msra.mxu0 %v1194
    %1321 = vmatprep.subr.mxu0 0.0
    %1322 = vmatpush1.msra.mxu0 %v1195
    %1323 = vmatprep.subr.mxu0 0.0
    %1324 = vmatpush1.msra.mxu0 %v1196
    %1325 = vmatprep.mubr.f32.mxu0 1.0
    %1326 = vmatmul.mubr.f32.gmra.mrb[0].mxu0 1.0
    %v1327 = vpop.f32.mrb[0].mxu0
    %v1328 = vadd.f32 0.0, %v1327
    %v1329 = vpop.f32.mrb[0].mxu0
    %1330 = vdwg.mxu0
    %1331 = vmatprep.subr.mxu0 0.0
    %1332 = vmatpush1.msra.mxu0 %v1197
    %1333 = vmatprep.subr.mxu0 0.0
    %1334 = vmatpush1.msra.mxu0 %v1198
    %1335 = vmatprep.subr.mxu0 0.0
    %1336 = vmatpush1.msra.mxu0 %v1199
    %1337 = vmatprep.subr.mxu0 0.0
    %1338 = vmatpush1.msra.mxu0 %v1200
    %1339 = vmatprep.subr.mxu0 0.0
    %1340 = vmatpush1.msra.mxu0 %v1201
    %1341 = vmatprep.subr.mxu0 0.0
    %1342 = vmatpush1.msra.mxu0 %v1202
    %1343 = vmatprep.subr.mxu0 0.0
    %1344 = vmatpush1.msra.mxu0 %v1203
    %1345 = vmatprep.subr.mxu0 0.0
    %1346 = vmatpush1.msra.mxu0 %v1204
    %1347 = vmatprep.subr.mxu0 0.0
    %1348 = vmatpush1.msra.mxu0 %v1205
    %1349 = vmatprep.subr.mxu0 0.0
    %1350 = vmatpush1.msra.mxu0 %v1206
    %1351 = vmatprep.subr.mxu0 0.0
    %1352 = vmatpush1.msra.mxu0 %v1207
    %1353 = vmatprep.subr.mxu0 0.0
    %1354 = vmatpush1.msra.mxu0 %v1208
    %1355 = vmatprep.subr.mxu0 0.0
    %1356 = vmatpush1.msra.mxu0 %v1209
    %1357 = vmatprep.subr.mxu0 0.0
    %1358 = vmatpush1.msra.mxu0 %v1210
    %1359 = vmatprep.subr.mxu0 0.0
    %1360 = vmatpush1.msra.mxu0 %v1211
    %1361 = vmatprep.subr.mxu0 0.0
    %1362 = vmatpush1.msra.mxu0 %v1212
    %1363 = vmatprep.subr.mxu0 0.0
    %1364 = vmatpush1.msra.mxu0 %v1213
    %1365 = vmatprep.subr.mxu0 0.0
    %1366 = vmatpush1.msra.mxu0 %v1214
    %1367 = vmatprep.subr.mxu0 0.0
    %1368 = vmatpush1.msra.mxu0 %v1215
    %1369 = vmatprep.subr.mxu0 0.0
    %1370 = vmatpush1.msra.mxu0 %v1216
    %1371 = vmatprep.subr.mxu0 0.0
    %1372 = vmatpush1.msra.mxu0 %v1217
    %1373 = vmatprep.subr.mxu0 0.0
    %1374 = vmatpush1.msra.mxu0 %v1218
    %1375 = vmatprep.subr.mxu0 0.0
    %1376 = vmatpush1.msra.mxu0 %v1219
    %1377 = vmatprep.subr.mxu0 0.0
    %1378 = vmatpush1.msra.mxu0 %v1220
    %1379 = vmatprep.subr.mxu0 0.0
    %1380 = vmatpush1.msra.mxu0 %v1221
    %1381 = vmatprep.subr.mxu0 0.0
    %1382 = vmatpush1.msra.mxu0 %v1222
    %1383 = vmatprep.subr.mxu0 0.0
    %1384 = vmatpush1.msra.mxu0 %v1223
    %1385 = vmatprep.subr.mxu0 0.0
    %1386 = vmatpush1.msra.mxu0 %v1224
    %1387 = vmatprep.subr.mxu0 0.0
    %1388 = vmatpush1.msra.mxu0 %v1225
    %1389 = vmatprep.subr.mxu0 0.0
    %1390 = vmatpush1.msra.mxu0 %v1226
    %1391 = vmatprep.subr.mxu0 0.0
    %1392 = vmatpush1.msra.mxu0 %v1227
    %1393 = vmatprep.subr.mxu0 0.0
    %1394 = vmatpush1.msra.mxu0 %v1228
    %1395 = vmatprep.mubr.f32.mxu0 1.0
    %1396 = vmatmul.mubr.f32.gmra.mrb[0].mxu0 1.0
    %v1397 = vpop.f32.mrb[0].mxu0
    %v1398 = vadd.f32 %v1328, %v1397
    %v1399 = vpop.f32.mrb[0].mxu0
    %1400 = vdwg.mxu0
    %1401 = vmatprep.subr.mxu0 0.0
    %1402 = vmatpush1.msra.mxu0 %v1229
    %1403 = vmatprep.subr.mxu0 0.0
    %1404 = vmatpush1.msra.mxu0 %v1230
    %1405 = vmatprep.subr.mxu0 0.0
    %1406 = vmatpush1.msra.mxu0 %v1231
    %1407 = vmatprep.subr.mxu0 0.0
    %1408 = vmatpush1.msra.mxu0 %v1232
    %1409 = vmatprep.subr.mxu0 0.0
    %1410 = vmatpush1.msra.mxu0 %v1233
    %1411 = vmatprep.subr.mxu0 0.0
    %1412 = vmatpush1.msra.mxu0 %v1234
    %1413 = vmatprep.subr.mxu0 0.0
    %1414 = vmatpush1.msra.mxu0 %v1235
    %1415 = vmatprep.subr.mxu0 0.0
    %1416 = vmatpush1.msra.mxu0 %v1236
    %1417 = vmatprep.subr.mxu0 0.0
    %1418 = vmatpush1.msra.mxu0 %v1237
    %1419 = vmatprep.subr.mxu0 0.0
    %1420 = vmatpush1.msra.mxu0 %v1238
    %1421 = vmatprep.subr.mxu0 0.0
    %1422 = vmatpush1.msra.mxu0 %v1239
    %1423 = vmatprep.subr.mxu0 0.0
    %1424 = vmatpush1.msra.mxu0 %v1240
    %1425 = vmatprep.subr.mxu0 0.0
    %1426 = vmatpush1.msra.mxu0 %v1241
    %1427 = vmatprep.subr.mxu0 0.0
    %1428 = vmatpush1.msra.mxu0 %v1242
    %1429 = vmatprep.subr.mxu0 0.0
    %1430 = vmatpush1.msra.mxu0 %v1243
    %1431 = vmatprep.subr.mxu0 0.0
    %1432 = vmatpush1.msra.mxu0 %v1244
    %1433 = vmatprep.subr.mxu0 0.0
    %1434 = vmatpush1.msra.mxu0 %v1245
    %1435 = vmatprep.subr.mxu0 0.0
    %1436 = vmatpush1.msra.mxu0 %v1246
    %1437 = vmatprep.subr.mxu0 0.0
    %1438 = vmatpush1.msra.mxu0 %v1247
    %1439 = vmatprep.subr.mxu0 0.0
    %1440 = vmatpush1.msra.mxu0 %v1248
    %1441 = vmatprep.subr.mxu0 0.0
    %1442 = vmatpush1.msra.mxu0 %v1249
    %1443 = vmatprep.subr.mxu0 0.0
    %1444 = vmatpush1.msra.mxu0 %v1250
    %1445 = vmatprep.subr.mxu0 0.0
    %1446 = vmatpush1.msra.mxu0 %v1251
    %1447 = vmatprep.subr.mxu0 0.0
    %1448 = vmatpush1.msra.mxu0 %v1252
    %1449 = vmatprep.subr.mxu0 0.0
    %1450 = vmatpush1.msra.mxu0 %v1253
    %1451 = vmatprep.subr.mxu0 0.0
    %1452 = vmatpush1.msra.mxu0 %v1254
    %1453 = vmatprep.subr.mxu0 0.0
    %1454 = vmatpush1.msra.mxu0 %v1255
    %1455 = vmatprep.subr.mxu0 0.0
    %1456 = vmatpush1.msra.mxu0 %v1256
    %1457 = vmatprep.subr.mxu0 0.0
    %1458 = vmatpush1.msra.mxu0 %v1257
    %1459 = vmatprep.subr.mxu0 0.0
    %1460 = vmatpush1.msra.mxu0 %v1258
    %1461 = vmatprep.subr.mxu0 0.0
    %1462 = vmatpush1.msra.mxu0 %v1259
    %1463 = vmatprep.subr.mxu0 0.0
    %1464 = vmatpush1.msra.mxu0 %v1260
    %1465 = vmatprep.mubr.f32.mxu0 1.0
    %1466 = vmatmul.mubr.f32.gmra.mrb[0].mxu0 1.0
    %v1467 = vpop.f32.mrb[0].mxu0
    %v1468 = vadd.f32 %v1398, %v1467
    %v1469 = vpop.f32.mrb[0].mxu0
    %1470 = vdwg.mxu0
    %v1471 = vmul.f32 %v1162, 0.0013020834
    %v1472 = vmul.f32 %v1468, 0.0013020834
    %v1473 = vmul.f32 %v1471, %v1471
    %v1474 = vsub.f32 %v1472, %v1473
    %v1475 = vlaneseq
    %v1476 = vshrl.u32 %v1475, 7
    %v1477 = vsub.s32 0, %v1476
    %v1478 = vrot.slane %v1471, %v1477
    %v1479 = vsub.f32 %v573, %v1478
    %v1480 = vsub.f32 %v576, %v1478
    %v1481 = vsub.f32 %v581, %v1478
    %v1482 = vsub.f32 %v584, %v1478
    %v1483 = vsub.f32 %v589, %v1478
    %v1484 = vsub.f32 %v592, %v1478
    %v1485 = vsub.f32 %v597, %v1478
    %v1486 = vsub.f32 %v600, %v1478
    %v1487 = vsub.f32 %v605, %v1478
    %v1488 = vsub.f32 %v608, %v1478
    %v1489 = vsub.f32 %v613, %v1478
    %v1490 = vsub.f32 %v616, %v1478
    %v1491 = vsub.f32 %v621, %v1478
    %v1492 = vsub.f32 %v624, %v1478
    %v1493 = vsub.f32 %v629, %v1478
    %v1494 = vsub.f32 %v632, %v1478
    %v1495 = vsub.f32 %v637, %v1478
    %v1496 = vsub.f32 %v640, %v1478
    %v1497 = vsub.f32 %v645, %v1478
    %v1498 = vsub.f32 %v648, %v1478
    %v1499 = vsub.f32 %v653, %v1478
    %v1500 = vsub.f32 %v656, %v1478
    %v1501 = vsub.f32 %v661, %v1478
    %v1502 = vsub.f32 %v664, %v1478
    %v1503 = vsub.f32 %v669, %v1478
    %v1504 = vsub.f32 %v672, %v1478
    %v1505 = vsub.f32 %v677, %v1478
    %v1506 = vsub.f32 %v680, %v1478
    %v1507 = vsub.f32 %v685, %v1478
    %v1508 = vsub.f32 %v688, %v1478
    %v1509 = vsub.f32 %v693, %v1478
    %v1510 = vsub.f32 %v696, %v1478
    %v1511 = vsub.f32 %v701, %v1478
    %v1512 = vsub.f32 %v704, %v1478
    %v1513 = vsub.f32 %v709, %v1478
    %v1514 = vsub.f32 %v712, %v1478
    %v1515 = vsub.f32 %v717, %v1478
    %v1516 = vsub.f32 %v720, %v1478
    %v1517 = vsub.f32 %v725, %v1478
    %v1518 = vsub.f32 %v728, %v1478
    %v1519 = vsub.f32 %v733, %v1478
    %v1520 = vsub.f32 %v736, %v1478
    %v1521 = vsub.f32 %v741, %v1478
    %v1522 = vsub.f32 %v744, %v1478
    %v1523 = vsub.f32 %v749, %v1478
    %v1524 = vsub.f32 %v752, %v1478
    %v1525 = vsub.f32 %v757, %v1478
    %v1526 = vsub.f32 %v760, %v1478
    %v1527 = vsub.f32 %v765, %v1478
    %v1528 = vsub.f32 %v768, %v1478
    %v1529 = vsub.f32 %v773, %v1478
    %v1530 = vsub.f32 %v776, %v1478
    %v1531 = vsub.f32 %v781, %v1478
    %v1532 = vsub.f32 %v784, %v1478
    %v1533 = vsub.f32 %v789, %v1478
    %v1534 = vsub.f32 %v792, %v1478
    %v1535 = vsub.f32 %v797, %v1478
    %v1536 = vsub.f32 %v800, %v1478
    %v1537 = vsub.f32 %v805, %v1478
    %v1538 = vsub.f32 %v808, %v1478
    %v1539 = vsub.f32 %v813, %v1478
    %v1540 = vsub.f32 %v816, %v1478
    %v1541 = vsub.f32 %v821, %v1478
    %v1542 = vsub.f32 %v824, %v1478
    %v1543 = vsub.f32 %v829, %v1478
    %v1544 = vsub.f32 %v832, %v1478
    %v1545 = vsub.f32 %v837, %v1478
    %v1546 = vsub.f32 %v840, %v1478
    %v1547 = vsub.f32 %v845, %v1478
    %v1548 = vsub.f32 %v848, %v1478
    %v1549 = vsub.f32 %v853, %v1478
    %v1550 = vsub.f32 %v856, %v1478
    %v1551 = vsub.f32 %v861, %v1478
    %v1552 = vsub.f32 %v864, %v1478
    %v1553 = vsub.f32 %v869, %v1478
    %v1554 = vsub.f32 %v872, %v1478
    %v1555 = vsub.f32 %v877, %v1478
    %v1556 = vsub.f32 %v880, %v1478
    %v1557 = vsub.f32 %v885, %v1478
    %v1558 = vsub.f32 %v888, %v1478
    %v1559 = vsub.f32 %v893, %v1478
    %v1560 = vsub.f32 %v896, %v1478
    %v1561 = vsub.f32 %v901, %v1478
    %v1562 = vsub.f32 %v904, %v1478
    %v1563 = vsub.f32 %v909, %v1478
    %v1564 = vsub.f32 %v912, %v1478
    %v1565 = vsub.f32 %v917, %v1478
    %v1566 = vsub.f32 %v920, %v1478
    %v1567 = vsub.f32 %v925, %v1478
    %v1568 = vsub.f32 %v928, %v1478
    %v1569 = vsub.f32 %v933, %v1478
    %v1570 = vsub.f32 %v936, %v1478
    %v1571 = vsub.f32 %v941, %v1478
    %v1572 = vsub.f32 %v944, %v1478
    %v1573 = vsub.f32 %v949, %v1478
    %v1574 = vsub.f32 %v952, %v1478
    %v1575 = vadd.f32 %v1474, 1e-05
    %v1576 = vrsqrt.pop %v1575
    %v1577 = vlaneseq
    %v1578 = vshrl.u32 %v1577, 7
    %v1579 = vsub.s32 0, %v1578
    %v1580 = vrot.slane %v1576, %v1579
    %v1581 = vmul.f32 %v1479, %v1580
    %v1582 = vmul.f32 %v1480, %v1580
    %v1583 = vmul.f32 %v1481, %v1580
    %v1584 = vmul.f32 %v1482, %v1580
    %v1585 = vmul.f32 %v1483, %v1580
    %v1586 = vmul.f32 %v1484, %v1580
    %v1587 = vmul.f32 %v1485, %v1580
    %v1588 = vmul.f32 %v1486, %v1580
    %v1589 = vmul.f32 %v1487, %v1580
    %v1590 = vmul.f32 %v1488, %v1580
    %v1591 = vmul.f32 %v1489, %v1580
    %v1592 = vmul.f32 %v1490, %v1580
    %v1593 = vmul.f32 %v1491, %v1580
    %v1594 = vmul.f32 %v1492, %v1580
    %v1595 = vmul.f32 %v1493, %v1580
    %v1596 = vmul.f32 %v1494, %v1580
    %v1597 = vmul.f32 %v1495, %v1580
    %v1598 = vmul.f32 %v1496, %v1580
    %v1599 = vmul.f32 %v1497, %v1580
    %v1600 = vmul.f32 %v1498, %v1580
    %v1601 = vmul.f32 %v1499, %v1580
    %v1602 = vmul.f32 %v1500, %v1580
    %v1603 = vmul.f32 %v1501, %v1580
    %v1604 = vmul.f32 %v1502, %v1580
    %v1605 = vmul.f32 %v1503, %v1580
    %v1606 = vmul.f32 %v1504, %v1580
    %v1607 = vmul.f32 %v1505, %v1580
    %v1608 = vmul.f32 %v1506, %v1580
    %v1609 = vmul.f32 %v1507, %v1580
    %v1610 = vmul.f32 %v1508, %v1580
    %v1611 = vmul.f32 %v1509, %v1580
    %v1612 = vmul.f32 %v1510, %v1580
    %v1613 = vmul.f32 %v1511, %v1580
    %v1614 = vmul.f32 %v1512, %v1580
    %v1615 = vmul.f32 %v1513, %v1580
    %v1616 = vmul.f32 %v1514, %v1580
    %v1617 = vmul.f32 %v1515, %v1580
    %v1618 = vmul.f32 %v1516, %v1580
    %v1619 = vmul.f32 %v1517, %v1580
    %v1620 = vmul.f32 %v1518, %v1580
    %v1621 = vmul.f32 %v1519, %v1580
    %v1622 = vmul.f32 %v1520, %v1580
    %v1623 = vmul.f32 %v1521, %v1580
    %v1624 = vmul.f32 %v1522, %v1580
    %v1625 = vmul.f32 %v1523, %v1580
    %v1626 = vmul.f32 %v1524, %v1580
    %v1627 = vmul.f32 %v1525, %v1580
    %v1628 = vmul.f32 %v1526, %v1580
    %v1629 = vmul.f32 %v1527, %v1580
    %v1630 = vmul.f32 %v1528, %v1580
    %v1631 = vmul.f32 %v1529, %v1580
    %v1632 = vmul.f32 %v1530, %v1580
    %v1633 = vmul.f32 %v1531, %v1580
    %v1634 = vmul.f32 %v1532, %v1580
    %v1635 = vmul.f32 %v1533, %v1580
    %v1636 = vmul.f32 %v1534, %v1580
    %v1637 = vmul.f32 %v1535, %v1580
    %v1638 = vmul.f32 %v1536, %v1580
    %v1639 = vmul.f32 %v1537, %v1580
    %v1640 = vmul.f32 %v1538, %v1580
    %v1641 = vmul.f32 %v1539, %v1580
    %v1642 = vmul.f32 %v1540, %v1580
    %v1643 = vmul.f32 %v1541, %v1580
    %v1644 = vmul.f32 %v1542, %v1580
    %v1645 = vmul.f32 %v1543, %v1580
    %v1646 = vmul.f32 %v1544, %v1580
    %v1647 = vmul.f32 %v1545, %v1580
    %v1648 = vmul.f32 %v1546, %v1580
    %v1649 = vmul.f32 %v1547, %v1580
    %v1650 = vmul.f32 %v1548, %v1580
    %v1651 = vmul.f32 %v1549, %v1580
    %v1652 = vmul.f32 %v1550, %v1580
    %v1653 = vmul.f32 %v1551, %v1580
    %v1654 = vmul.f32 %v1552, %v1580
    %v1655 = vmul.f32 %v1553, %v1580
    %v1656 = vmul.f32 %v1554, %v1580
    %v1657 = vmul.f32 %v1555, %v1580
    %v1658 = vmul.f32 %v1556, %v1580
    %v1659 = vmul.f32 %v1557, %v1580
    %v1660 = vmul.f32 %v1558, %v1580
    %v1661 = vmul.f32 %v1559, %v1580
    %v1662 = vmul.f32 %v1560, %v1580
    %v1663 = vmul.f32 %v1561, %v1580
    %v1664 = vmul.f32 %v1562, %v1580
    %v1665 = vmul.f32 %v1563, %v1580
    %v1666 = vmul.f32 %v1564, %v1580
    %v1667 = vmul.f32 %v1565, %v1580
    %v1668 = vmul.f32 %v1566, %v1580
    %v1669 = vmul.f32 %v1567, %v1580
    %v1670 = vmul.f32 %v1568, %v1580
    %v1671 = vmul.f32 %v1569, %v1580
    %v1672 = vmul.f32 %v1570, %v1580
    %v1673 = vmul.f32 %v1571, %v1580
    %v1674 = vmul.f32 %v1572, %v1580
    %v1675 = vmul.f32 %v1573, %v1580
    %v1676 = vmul.f32 %v1574, %v1580
    %v1677 = vld [vmem:[%s3] sm:$0x1]
    %v1679 = vlaneseq
    %v1680 = vshrl.u32 %v1679, 7
    %v1681 = vsub.s32 0, %v1680
    %v1682 = vrot.slane %v1677, %v1681
    %v1684 = vmul.f32 %v1581, %v1682
    %v1685 = vmul.f32 %v1582, %v1682
    %v1686 = vmul.f32 %v1583, %v1682
    %v1687 = vmul.f32 %v1584, %v1682
    %v1688 = vmul.f32 %v1585, %v1682
    %v1689 = vmul.f32 %v1586, %v1682
    %v1690 = vmul.f32 %v1587, %v1682
    %v1691 = vmul.f32 %v1588, %v1682
    %v1692 = vmul.f32 %v1589, %v1682
    %v1693 = vmul.f32 %v1590, %v1682
    %v1694 = vmul.f32 %v1591, %v1682
    %v1695 = vmul.f32 %v1592, %v1682
    %v1696 = vmul.f32 %v1593, %v1682
    %v1697 = vmul.f32 %v1594, %v1682
    %v1698 = vmul.f32 %v1595, %v1682
    %v1699 = vmul.f32 %v1596, %v1682
    %v1700 = vmul.f32 %v1597, %v1682
    %v1701 = vmul.f32 %v1598, %v1682
    %v1702 = vmul.f32 %v1599, %v1682
    %v1703 = vmul.f32 %v1600, %v1682
    %v1704 = vmul.f32 %v1601, %v1682
    %v1705 = vmul.f32 %v1602, %v1682
    %v1706 = vmul.f32 %v1603, %v1682
    %v1707 = vmul.f32 %v1604, %v1682
    %v1708 = vmul.f32 %v1605, %v1682
    %v1709 = vmul.f32 %v1606, %v1682
    %v1710 = vmul.f32 %v1607, %v1682
    %v1711 = vmul.f32 %v1608, %v1682
    %v1712 = vmul.f32 %v1609, %v1682
    %v1713 = vmul.f32 %v1610, %v1682
    %v1714 = vmul.f32 %v1611, %v1682
    %v1715 = vmul.f32 %v1612, %v1682
    %v1716 = vmul.f32 %v1613, %v1682
    %v1717 = vmul.f32 %v1614, %v1682
    %v1718 = vmul.f32 %v1615, %v1682
    %v1719 = vmul.f32 %v1616, %v1682
    %v1720 = vmul.f32 %v1617, %v1682
    %v1721 = vmul.f32 %v1618, %v1682
    %v1722 = vmul.f32 %v1619, %v1682
    %v1723 = vmul.f32 %v1620, %v1682
    %v1724 = vmul.f32 %v1621, %v1682
    %v1725 = vmul.f32 %v1622, %v1682
    %v1726 = vmul.f32 %v1623, %v1682
    %v1727 = vmul.f32 %v1624, %v1682
    %v1728 = vmul.f32 %v1625, %v1682
    %v1729 = vmul.f32 %v1626, %v1682
    %v1730 = vmul.f32 %v1627, %v1682
    %v1731 = vmul.f32 %v1628, %v1682
    %v1732 = vmul.f32 %v1629, %v1682
    %v1733 = vmul.f32 %v1630, %v1682
    %v1734 = vmul.f32 %v1631, %v1682
    %v1735 = vmul.f32 %v1632, %v1682
    %v1736 = vmul.f32 %v1633, %v1682
    %v1737 = vmul.f32 %v1634, %v1682
    %v1738 = vmul.f32 %v1635, %v1682
    %v1739 = vmul.f32 %v1636, %v1682
    %v1740 = vmul.f32 %v1637, %v1682
    %v1741 = vmul.f32 %v1638, %v1682
    %v1742 = vmul.f32 %v1639, %v1682
    %v1743 = vmul.f32 %v1640, %v1682
    %v1744 = vmul.f32 %v1641, %v1682
    %v1745 = vmul.f32 %v1642, %v1682
    %v1746 = vmul.f32 %v1643, %v1682
    %v1747 = vmul.f32 %v1644, %v1682
    %v1748 = vmul.f32 %v1645, %v1682
    %v1749 = vmul.f32 %v1646, %v1682
    %v1750 = vmul.f32 %v1647, %v1682
    %v1751 = vmul.f32 %v1648, %v1682
    %v1752 = vmul.f32 %v1649, %v1682
    %v1753 = vmul.f32 %v1650, %v1682
    %v1754 = vmul.f32 %v1651, %v1682
    %v1755 = vmul.f32 %v1652, %v1682
    %v1756 = vmul.f32 %v1653, %v1682
    %v1757 = vmul.f32 %v1654, %v1682
    %v1758 = vmul.f32 %v1655, %v1682
    %v1759 = vmul.f32 %v1656, %v1682
    %v1760 = vmul.f32 %v1657, %v1682
    %v1761 = vmul.f32 %v1658, %v1682
    %v1762 = vmul.f32 %v1659, %v1682
    %v1763 = vmul.f32 %v1660, %v1682
    %v1764 = vmul.f32 %v1661, %v1682
    %v1765 = vmul.f32 %v1662, %v1682
    %v1766 = vmul.f32 %v1663, %v1682
    %v1767 = vmul.f32 %v1664, %v1682
    %v1768 = vmul.f32 %v1665, %v1682
    %v1769 = vmul.f32 %v1666, %v1682
    %v1770 = vmul.f32 %v1667, %v1682
    %v1771 = vmul.f32 %v1668, %v1682
    %v1772 = vmul.f32 %v1669, %v1682
    %v1773 = vmul.f32 %v1670, %v1682
    %v1774 = vmul.f32 %v1671, %v1682
    %v1775 = vmul.f32 %v1672, %v1682
    %v1776 = vmul.f32 %v1673, %v1682
    %v1777 = vmul.f32 %v1674, %v1682
    %v1778 = vmul.f32 %v1675, %v1682
    %v1779 = vmul.f32 %v1676, %v1682
    %v1780 = vld [vmem:[%s4] sm:$0x1]
    %v1782 = vlaneseq
    %v1783 = vshrl.u32 %v1782, 7
    %v1784 = vsub.s32 0, %v1783
    %v1785 = vrot.slane %v1780, %v1784
    %v1787 = vadd.f32 %v1684, %v1785
    %v1788 = vadd.f32 %v1685, %v1785
    %v1789 = vadd.f32 %v1686, %v1785
    %v1790 = vadd.f32 %v1687, %v1785
    %v1791 = vadd.f32 %v1688, %v1785
    %v1792 = vadd.f32 %v1689, %v1785
    %v1793 = vadd.f32 %v1690, %v1785
    %v1794 = vadd.f32 %v1691, %v1785
    %v1795 = vadd.f32 %v1692, %v1785
    %v1796 = vadd.f32 %v1693, %v1785
    %v1797 = vadd.f32 %v1694, %v1785
    %v1798 = vadd.f32 %v1695, %v1785
    %v1799 = vadd.f32 %v1696, %v1785
    %v1800 = vadd.f32 %v1697, %v1785
    %v1801 = vadd.f32 %v1698, %v1785
    %v1802 = vadd.f32 %v1699, %v1785
    %v1803 = vadd.f32 %v1700, %v1785
    %v1804 = vadd.f32 %v1701, %v1785
    %v1805 = vadd.f32 %v1702, %v1785
    %v1806 = vadd.f32 %v1703, %v1785
    %v1807 = vadd.f32 %v1704, %v1785
    %v1808 = vadd.f32 %v1705, %v1785
    %v1809 = vadd.f32 %v1706, %v1785
    %v1810 = vadd.f32 %v1707, %v1785
    %v1811 = vadd.f32 %v1708, %v1785
    %v1812 = vadd.f32 %v1709, %v1785
    %v1813 = vadd.f32 %v1710, %v1785
    %v1814 = vadd.f32 %v1711, %v1785
    %v1815 = vadd.f32 %v1712, %v1785
    %v1816 = vadd.f32 %v1713, %v1785
    %v1817 = vadd.f32 %v1714, %v1785
    %v1818 = vadd.f32 %v1715, %v1785
    %v1819 = vadd.f32 %v1716, %v1785
    %v1820 = vadd.f32 %v1717, %v1785
    %v1821 = vadd.f32 %v1718, %v1785
    %v1822 = vadd.f32 %v1719, %v1785
    %v1823 = vadd.f32 %v1720, %v1785
    %v1824 = vadd.f32 %v1721, %v1785
    %v1825 = vadd.f32 %v1722, %v1785
    %v1826 = vadd.f32 %v1723, %v1785
    %v1827 = vadd.f32 %v1724, %v1785
    %v1828 = vadd.f32 %v1725, %v1785
    %v1829 = vadd.f32 %v1726, %v1785
    %v1830 = vadd.f32 %v1727, %v1785
    %v1831 = vadd.f32 %v1728, %v1785
    %v1832 = vadd.f32 %v1729, %v1785
    %v1833 = vadd.f32 %v1730, %v1785
    %v1834 = vadd.f32 %v1731, %v1785
    %v1835 = vadd.f32 %v1732, %v1785
    %v1836 = vadd.f32 %v1733, %v1785
    %v1837 = vadd.f32 %v1734, %v1785
    %v1838 = vadd.f32 %v1735, %v1785
    %v1839 = vadd.f32 %v1736, %v1785
    %v1840 = vadd.f32 %v1737, %v1785
    %v1841 = vadd.f32 %v1738, %v1785
    %v1842 = vadd.f32 %v1739, %v1785
    %v1843 = vadd.f32 %v1740, %v1785
    %v1844 = vadd.f32 %v1741, %v1785
    %v1845 = vadd.f32 %v1742, %v1785
    %v1846 = vadd.f32 %v1743, %v1785
    %v1847 = vadd.f32 %v1744, %v1785
    %v1848 = vadd.f32 %v1745, %v1785
    %v1849 = vadd.f32 %v1746, %v1785
    %v1850 = vadd.f32 %v1747, %v1785
    %v1851 = vadd.f32 %v1748, %v1785
    %v1852 = vadd.f32 %v1749, %v1785
    %v1853 = vadd.f32 %v1750, %v1785
    %v1854 = vadd.f32 %v1751, %v1785
    %v1855 = vadd.f32 %v1752, %v1785
    %v1856 = vadd.f32 %v1753, %v1785
    %v1857 = vadd.f32 %v1754, %v1785
    %v1858 = vadd.f32 %v1755, %v1785
    %v1859 = vadd.f32 %v1756, %v1785
    %v1860 = vadd.f32 %v1757, %v1785
    %v1861 = vadd.f32 %v1758, %v1785
    %v1862 = vadd.f32 %v1759, %v1785
    %v1863 = vadd.f32 %v1760, %v1785
    %v1864 = vadd.f32 %v1761, %v1785
    %v1865 = vadd.f32 %v1762, %v1785
    %v1866 = vadd.f32 %v1763, %v1785
    %v1867 = vadd.f32 %v1764, %v1785
    %v1868 = vadd.f32 %v1765, %v1785
    %v1869 = vadd.f32 %v1766, %v1785
    %v1870 = vadd.f32 %v1767, %v1785
    %v1871 = vadd.f32 %v1768, %v1785
    %v1872 = vadd.f32 %v1769, %v1785
    %v1873 = vadd.f32 %v1770, %v1785
    %v1874 = vadd.f32 %v1771, %v1785
    %v1875 = vadd.f32 %v1772, %v1785
    %v1876 = vadd.f32 %v1773, %v1785
    %v1877 = vadd.f32 %v1774, %v1785
    %v1878 = vadd.f32 %v1775, %v1785
    %v1879 = vadd.f32 %v1776, %v1785
    %v1880 = vadd.f32 %v1777, %v1785
    %v1881 = vadd.f32 %v1778, %v1785
    %v1882 = vadd.f32 %v1779, %v1785
    %v1883 = vmax.f32 %v1787, 0.0
    %v1884 = vmax.f32 %v1788, 0.0
    %v1885 = vmax.f32 %v1789, 0.0
    %v1886 = vmax.f32 %v1790, 0.0
    %v1887 = vmax.f32 %v1791, 0.0
    %v1888 = vmax.f32 %v1792, 0.0
    %v1889 = vmax.f32 %v1793, 0.0
    %v1890 = vmax.f32 %v1794, 0.0
    %v1891 = vmax.f32 %v1795, 0.0
    %v1892 = vmax.f32 %v1796, 0.0
    %v1893 = vmax.f32 %v1797, 0.0
    %v1894 = vmax.f32 %v1798, 0.0
    %v1895 = vmax.f32 %v1799, 0.0
    %v1896 = vmax.f32 %v1800, 0.0
    %v1897 = vmax.f32 %v1801, 0.0
    %v1898 = vmax.f32 %v1802, 0.0
    %v1899 = vmax.f32 %v1803, 0.0
    %v1900 = vmax.f32 %v1804, 0.0
    %v1901 = vmax.f32 %v1805, 0.0
    %v1902 = vmax.f32 %v1806, 0.0
    %v1903 = vmax.f32 %v1807, 0.0
    %v1904 = vmax.f32 %v1808, 0.0
    %v1905 = vmax.f32 %v1809, 0.0
    %v1906 = vmax.f32 %v1810, 0.0
    %v1907 = vmax.f32 %v1811, 0.0
    %v1908 = vmax.f32 %v1812, 0.0
    %v1909 = vmax.f32 %v1813, 0.0
    %v1910 = vmax.f32 %v1814, 0.0
    %v1911 = vmax.f32 %v1815, 0.0
    %v1912 = vmax.f32 %v1816, 0.0
    %v1913 = vmax.f32 %v1817, 0.0
    %v1914 = vmax.f32 %v1818, 0.0
    %v1915 = vmax.f32 %v1819, 0.0
    %v1916 = vmax.f32 %v1820, 0.0
    %v1917 = vmax.f32 %v1821, 0.0
    %v1918 = vmax.f32 %v1822, 0.0
    %v1919 = vmax.f32 %v1823, 0.0
    %v1920 = vmax.f32 %v1824, 0.0
    %v1921 = vmax.f32 %v1825, 0.0
    %v1922 = vmax.f32 %v1826, 0.0
    %v1923 = vmax.f32 %v1827, 0.0
    %v1924 = vmax.f32 %v1828, 0.0
    %v1925 = vmax.f32 %v1829, 0.0
    %v1926 = vmax.f32 %v1830, 0.0
    %v1927 = vmax.f32 %v1831, 0.0
    %v1928 = vmax.f32 %v1832, 0.0
    %v1929 = vmax.f32 %v1833, 0.0
    %v1930 = vmax.f32 %v1834, 0.0
    %v1931 = vmax.f32 %v1835, 0.0
    %v1932 = vmax.f32 %v1836, 0.0
    %v1933 = vmax.f32 %v1837, 0.0
    %v1934 = vmax.f32 %v1838, 0.0
    %v1935 = vmax.f32 %v1839, 0.0
    %v1936 = vmax.f32 %v1840, 0.0
    %v1937 = vmax.f32 %v1841, 0.0
    %v1938 = vmax.f32 %v1842, 0.0
    %v1939 = vmax.f32 %v1843, 0.0
    %v1940 = vmax.f32 %v1844, 0.0
    %v1941 = vmax.f32 %v1845, 0.0
    %v1942 = vmax.f32 %v1846, 0.0
    %v1943 = vmax.f32 %v1847, 0.0
    %v1944 = vmax.f32 %v1848, 0.0
    %v1945 = vmax.f32 %v1849, 0.0
    %v1946 = vmax.f32 %v1850, 0.0
    %v1947 = vmax.f32 %v1851, 0.0
    %v1948 = vmax.f32 %v1852, 0.0
    %v1949 = vmax.f32 %v1853, 0.0
    %v1950 = vmax.f32 %v1854, 0.0
    %v1951 = vmax.f32 %v1855, 0.0
    %v1952 = vmax.f32 %v1856, 0.0
    %v1953 = vmax.f32 %v1857, 0.0
    %v1954 = vmax.f32 %v1858, 0.0
    %v1955 = vmax.f32 %v1859, 0.0
    %v1956 = vmax.f32 %v1860, 0.0
    %v1957 = vmax.f32 %v1861, 0.0
    %v1958 = vmax.f32 %v1862, 0.0
    %v1959 = vmax.f32 %v1863, 0.0
    %v1960 = vmax.f32 %v1864, 0.0
    %v1961 = vmax.f32 %v1865, 0.0
    %v1962 = vmax.f32 %v1866, 0.0
    %v1963 = vmax.f32 %v1867, 0.0
    %v1964 = vmax.f32 %v1868, 0.0
    %v1965 = vmax.f32 %v1869, 0.0
    %v1966 = vmax.f32 %v1870, 0.0
    %v1967 = vmax.f32 %v1871, 0.0
    %v1968 = vmax.f32 %v1872, 0.0
    %v1969 = vmax.f32 %v1873, 0.0
    %v1970 = vmax.f32 %v1874, 0.0
    %v1971 = vmax.f32 %v1875, 0.0
    %v1972 = vmax.f32 %v1876, 0.0
    %v1973 = vmax.f32 %v1877, 0.0
    %v1974 = vmax.f32 %v1878, 0.0
    %v1975 = vmax.f32 %v1879, 0.0
    %v1976 = vmax.f32 %v1880, 0.0
    %v1977 = vmax.f32 %v1881, 0.0
    %v1978 = vmax.f32 %v1882, 0.0
    %v1979 = vlaneseq
    %v1980 = vshrl.u32 %v1979, 7
    %v1981 = vadd.s32 %v1980, 8
    %v1982 = vadd.s32 %v1980, 16
    %v1983 = vadd.s32 %v1980, 24
    %v1984 = vadd.s32 %v1980, 32
    %v1985 = vadd.s32 %v1980, 40
    %v1986 = vlaneseq
    %v1987 = vand.u32 %v1986, 127
    %v1988 = vadd.s32 %v1987, 128
    %v1989 = vadd.s32 %v1987, 256
    %v1990 = vadd.s32 %v1987, 384
    %v1991 = vadd.s32 %v1987, 512
    %v1992 = vadd.s32 %v1987, 640
    %v1993 = vmul.u32 %v1980, 16
    %v1994 = vmul.u32 %v1981, 16
    %v1995 = vmul.u32 %v1982, 16
    %v1996 = vmul.u32 %v1983, 16
    %v1997 = vmul.u32 %v1984, 16
    %v1998 = vmul.u32 %v1985, 16
    %vm1999 = vcmp.ge.s32.totalorder %v1987, %v1993
    %vm2000 = vcmp.ge.s32.totalorder %v1988, %v1993
    %vm2001 = vcmp.ge.s32.totalorder %v1989, %v1993
    %vm2002 = vcmp.ge.s32.totalorder %v1990, %v1993
    %vm2003 = vcmp.ge.s32.totalorder %v1991, %v1993
    %vm2004 = vcmp.ge.s32.totalorder %v1992, %v1993
    %vm2005 = vcmp.ge.s32.totalorder %v1987, %v1994
    %vm2006 = vcmp.ge.s32.totalorder %v1988, %v1994
    %vm2007 = vcmp.ge.s32.totalorder %v1989, %v1994
    %vm2008 = vcmp.ge.s32.totalorder %v1990, %v1994
    %vm2009 = vcmp.ge.s32.totalorder %v1991, %v1994
    %vm2010 = vcmp.ge.s32.totalorder %v1992, %v1994
    %vm2011 = vcmp.ge.s32.totalorder %v1987, %v1995
    %vm2012 = vcmp.ge.s32.totalorder %v1988, %v1995
    %vm2013 = vcmp.ge.s32.totalorder %v1989, %v1995
    %vm2014 = vcmp.ge.s32.totalorder %v1990, %v1995
    %vm2015 = vcmp.ge.s32.totalorder %v1991, %v1995
    %vm2016 = vcmp.ge.s32.totalorder %v1992, %v1995
    %vm2017 = vcmp.ge.s32.totalorder %v1987, %v1996
    %vm2018 = vcmp.ge.s32.totalorder %v1988, %v1996
    %vm2019 = vcmp.ge.s32.totalorder %v1989, %v1996
    %vm2020 = vcmp.ge.s32.totalorder %v1990, %v1996
    %vm2021 = vcmp.ge.s32.totalorder %v1991, %v1996
    %vm2022 = vcmp.ge.s32.totalorder %v1992, %v1996
    %vm2023 = vcmp.ge.s32.totalorder %v1987, %v1997
    %vm2024 = vcmp.ge.s32.totalorder %v1988, %v1997
    %vm2025 = vcmp.ge.s32.totalorder %v1989, %v1997
    %vm2026 = vcmp.ge.s32.totalorder %v1990, %v1997
    %vm2027 = vcmp.ge.s32.totalorder %v1991, %v1997
    %vm2028 = vcmp.ge.s32.totalorder %v1992, %v1997
    %vm2029 = vcmp.ge.s32.totalorder %v1987, %v1998
    %vm2030 = vcmp.ge.s32.totalorder %v1988, %v1998
    %vm2031 = vcmp.ge.s32.totalorder %v1989, %v1998
    %vm2032 = vcmp.ge.s32.totalorder %v1990, %v1998
    %vm2033 = vcmp.ge.s32.totalorder %v1991, %v1998
    %vm2034 = vcmp.ge.s32.totalorder %v1992, %v1998
    %v2035 = vadd.s32 %v1993, 16
    %v2036 = vadd.s32 %v1994, 16
    %v2037 = vadd.s32 %v1995, 16
    %v2038 = vadd.s32 %v1996, 16
    %v2039 = vadd.s32 %v1997, 16
    %v2040 = vadd.s32 %v1998, 16
    %vm2041 = vcmp.lt.s32.totalorder %v1987, %v2035
    %vm2042 = vcmp.lt.s32.totalorder %v1988, %v2035
    %vm2043 = vcmp.lt.s32.totalorder %v1989, %v2035
    %vm2044 = vcmp.lt.s32.totalorder %v1990, %v2035
    %vm2045 = vcmp.lt.s32.totalorder %v1991, %v2035
    %vm2046 = vcmp.lt.s32.totalorder %v1992, %v2035
    %vm2047 = vcmp.lt.s32.totalorder %v1987, %v2036
    %vm2048 = vcmp.lt.s32.totalorder %v1988, %v2036
    %vm2049 = vcmp.lt.s32.totalorder %v1989, %v2036
    %vm2050 = vcmp.lt.s32.totalorder %v1990, %v2036
    %vm2051 = vcmp.lt.s32.totalorder %v1991, %v2036
    %vm2052 = vcmp.lt.s32.totalorder %v1992, %v2036
    %vm2053 = vcmp.lt.s32.totalorder %v1987, %v2037
    %vm2054 = vcmp.lt.s32.totalorder %v1988, %v2037
    %vm2055 = vcmp.lt.s32.totalorder %v1989, %v2037
    %vm2056 = vcmp.lt.s32.totalorder %v1990, %v2037
    %vm2057 = vcmp.lt.s32.totalorder %v1991, %v2037
    %vm2058 = vcmp.lt.s32.totalorder %v1992, %v2037
    %vm2059 = vcmp.lt.s32.totalorder %v1987, %v2038
    %vm2060 = vcmp.lt.s32.totalorder %v1988, %v2038
    %vm2061 = vcmp.lt.s32.totalorder %v1989, %v2038
    %vm2062 = vcmp.lt.s32.totalorder %v1990, %v2038
    %vm2063 = vcmp.lt.s32.totalorder %v1991, %v2038
    %vm2064 = vcmp.lt.s32.totalorder %v1992, %v2038
    %vm2065 = vcmp.lt.s32.totalorder %v1987, %v2039
    %vm2066 = vcmp.lt.s32.totalorder %v1988, %v2039
    %vm2067 = vcmp.lt.s32.totalorder %v1989, %v2039
    %vm2068 = vcmp.lt.s32.totalorder %v1990, %v2039
    %vm2069 = vcmp.lt.s32.totalorder %v1991, %v2039
    %vm2070 = vcmp.lt.s32.totalorder %v1992, %v2039
    %vm2071 = vcmp.lt.s32.totalorder %v1987, %v2040
    %vm2072 = vcmp.lt.s32.totalorder %v1988, %v2040
    %vm2073 = vcmp.lt.s32.totalorder %v1989, %v2040
    %vm2074 = vcmp.lt.s32.totalorder %v1990, %v2040
    %vm2075 = vcmp.lt.s32.totalorder %v1991, %v2040
    %vm2076 = vcmp.lt.s32.totalorder %v1992, %v2040
    %vm2077 = vmand %vm1999, %vm2041
    %vm2078 = vmand %vm2000, %vm2042
    %vm2079 = vmand %vm2001, %vm2043
    %vm2080 = vmand %vm2002, %vm2044
    %vm2081 = vmand %vm2003, %vm2045
    %vm2082 = vmand %vm2004, %vm2046
    %vm2083 = vmand %vm2005, %vm2047
    %vm2084 = vmand %vm2006, %vm2048
    %vm2085 = vmand %vm2007, %vm2049
    %vm2086 = vmand %vm2008, %vm2050
    %vm2087 = vmand %vm2009, %vm2051
    %vm2088 = vmand %vm2010, %vm2052
    %vm2089 = vmand %vm2011, %vm2053
    %vm2090 = vmand %vm2012, %vm2054
    %vm2091 = vmand %vm2013, %vm2055
    %vm2092 = vmand %vm2014, %vm2056
    %vm2093 = vmand %vm2015, %vm2057
    %vm2094 = vmand %vm2016, %vm2058
    %vm2095 = vmand %vm2017, %vm2059
    %vm2096 = vmand %vm2018, %vm2060
    %vm2097 = vmand %vm2019, %vm2061
    %vm2098 = vmand %vm2020, %vm2062
    %vm2099 = vmand %vm2021, %vm2063
    %vm2100 = vmand %vm2022, %vm2064
    %vm2101 = vmand %vm2023, %vm2065
    %vm2102 = vmand %vm2024, %vm2066
    %vm2103 = vmand %vm2025, %vm2067
    %vm2104 = vmand %vm2026, %vm2068
    %vm2105 = vmand %vm2027, %vm2069
    %vm2106 = vmand %vm2028, %vm2070
    %vm2107 = vmand %vm2029, %vm2071
    %vm2108 = vmand %vm2030, %vm2072
    %vm2109 = vmand %vm2031, %vm2073
    %vm2110 = vmand %vm2032, %vm2074
    %vm2111 = vmand %vm2033, %vm2075
    %vm2112 = vmand %vm2034, %vm2076
    %v2113 = vsel %vm2077, 0.0625, 0.0
    %v2114 = vsel %vm2078, 0.0625, 0.0
    %v2115 = vsel %vm2079, 0.0625, 0.0
    %v2116 = vsel %vm2080, 0.0625, 0.0
    %v2117 = vsel %vm2081, 0.0625, 0.0
    %v2118 = vsel %vm2082, 0.0625, 0.0
    %v2119 = vsel %vm2083, 0.0625, 0.0
    %v2120 = vsel %vm2084, 0.0625, 0.0
    %v2121 = vsel %vm2085, 0.0625, 0.0
    %v2122 = vsel %vm2086, 0.0625, 0.0
    %v2123 = vsel %vm2087, 0.0625, 0.0
    %v2124 = vsel %vm2088, 0.0625, 0.0
    %v2125 = vsel %vm2089, 0.0625, 0.0
    %v2126 = vsel %vm2090, 0.0625, 0.0
    %v2127 = vsel %vm2091, 0.0625, 0.0
    %v2128 = vsel %vm2092, 0.0625, 0.0
    %v2129 = vsel %vm2093, 0.0625, 0.0
    %v2130 = vsel %vm2094, 0.0625, 0.0
    %v2131 = vsel %vm2095, 0.0625, 0.0
    %v2132 = vsel %vm2096, 0.0625, 0.0
    %v2133 = vsel %vm2097, 0.0625, 0.0
    %v2134 = vsel %vm2098, 0.0625, 0.0
    %v2135 = vsel %vm2099, 0.0625, 0.0
    %v2136 = vsel %vm2100, 0.0625, 0.0
    %v2137 = vsel %vm2101, 0.0625, 0.0
    %v2138 = vsel %vm2102, 0.0625, 0.0
    %v2139 = vsel %vm2103, 0.0625, 0.0
    %v2140 = vsel %vm2104, 0.0625, 0.0
    %v2141 = vsel %vm2105, 0.0625, 0.0
    %v2142 = vsel %vm2106, 0.0625, 0.0
    %v2143 = vsel %vm2107, 0.0625, 0.0
    %v2144 = vsel %vm2108, 0.0625, 0.0
    %v2145 = vsel %vm2109, 0.0625, 0.0
    %v2146 = vsel %vm2110, 0.0625, 0.0
    %v2147 = vsel %vm2111, 0.0625, 0.0
    %v2148 = vsel %vm2112, 0.0625, 0.0
    %2149 = vmatprep.subr.mxu0 0.0
    %2150 = vmatpush1.msra.mxu0 %v1883
    %2151 = vmatprep.subr.mxu0 0.0
    %2152 = vmatpush1.msra.mxu0 %v1884
    %2153 = vmatprep.subr.mxu0 0.0
    %2154 = vmatpush1.msra.mxu0 %v1885
    %2155 = vmatprep.subr.mxu0 0.0
    %2156 = vmatpush1.msra.mxu0 %v1886
    %2157 = vmatprep.subr.mxu0 0.0
    %2158 = vmatpush1.msra.mxu0 %v1887
    %2159 = vmatprep.subr.mxu0 0.0
    %2160 = vmatpush1.msra.mxu0 %v1888
    %2161 = vmatprep.subr.mxu0 0.0
    %2162 = vmatpush1.msra.mxu0 %v1889
    %2163 = vmatprep.subr.mxu0 0.0
    %2164 = vmatpush1.msra.mxu0 %v1890
    %2165 = vmatprep.subr.mxu0 0.0
    %2166 = vmatpush1.msra.mxu0 %v1891
    %2167 = vmatprep.subr.mxu0 0.0
    %2168 = vmatpush1.msra.mxu0 %v1892
    %2169 = vmatprep.subr.mxu0 0.0
    %2170 = vmatpush1.msra.mxu0 %v1893
    %2171 = vmatprep.subr.mxu0 0.0
    %2172 = vmatpush1.msra.mxu0 %v1894
    %2173 = vmatprep.subr.mxu0 0.0
    %2174 = vmatpush1.msra.mxu0 %v1895
    %2175 = vmatprep.subr.mxu0 0.0
    %2176 = vmatpush1.msra.mxu0 %v1896
    %2177 = vmatprep.subr.mxu0 0.0
    %2178 = vmatpush1.msra.mxu0 %v1897
    %2179 = vmatprep.subr.mxu0 0.0
    %2180 = vmatpush1.msra.mxu0 %v1898
    %2181 = vmatprep.subr.mxu0 0.0
    %2182 = vmatpush1.msra.mxu0 %v1899
    %2183 = vmatprep.subr.mxu0 0.0
    %2184 = vmatpush1.msra.mxu0 %v1900
    %2185 = vmatprep.subr.mxu0 0.0
    %2186 = vmatpush1.msra.mxu0 %v1901
    %2187 = vmatprep.subr.mxu0 0.0
    %2188 = vmatpush1.msra.mxu0 %v1902
    %2189 = vmatprep.subr.mxu0 0.0
    %2190 = vmatpush1.msra.mxu0 %v1903
    %2191 = vmatprep.subr.mxu0 0.0
    %2192 = vmatpush1.msra.mxu0 %v1904
    %2193 = vmatprep.subr.mxu0 0.0
    %2194 = vmatpush1.msra.mxu0 %v1905
    %2195 = vmatprep.subr.mxu0 0.0
    %2196 = vmatpush1.msra.mxu0 %v1906
    %2197 = vmatprep.subr.mxu0 0.0
    %2198 = vmatpush1.msra.mxu0 %v1907
    %2199 = vmatprep.subr.mxu0 0.0
    %2200 = vmatpush1.msra.mxu0 %v1908
    %2201 = vmatprep.subr.mxu0 0.0
    %2202 = vmatpush1.msra.mxu0 %v1909
    %2203 = vmatprep.subr.mxu0 0.0
    %2204 = vmatpush1.msra.mxu0 %v1910
    %2205 = vmatprep.subr.mxu0 0.0
    %2206 = vmatpush1.msra.mxu0 %v1911
    %2207 = vmatprep.subr.mxu0 0.0
    %2208 = vmatpush1.msra.mxu0 %v1912
    %2209 = vmatprep.subr.mxu0 0.0
    %2210 = vmatpush1.msra.mxu0 %v1913
    %2211 = vmatprep.subr.mxu0 0.0
    %2212 = vmatpush1.msra.mxu0 %v1914
    %2213 = vmatprep.mubr.f32.mxu0 %v2114
    %2214 = vmatmul.mubr.f32.gmra.mrb[0].mxu0 %v2113
    %v2215 = vpop.f32.mrb[0].mxu0
    %v2216 = vadd.f32 0.0, %v2215
    %v2217 = vpop.f32.mrb[0].mxu0
    %2218 = vmatprep.mubr.f32.mxu0 %v2120
    %2219 = vmatmul.mubr.f32.gmra.mrb[0].mxu0 %v2119
    %v2220 = vpop.f32.mrb[0].mxu0
    %v2221 = vadd.f32 0.0, %v2220
    %v2222 = vpop.f32.mrb[0].mxu0
    %2223 = vmatprep.mubr.f32.mxu0 %v2126
    %2224 = vmatmul.mubr.f32.gmra.mrb[0].mxu0 %v2125
    %v2225 = vpop.f32.mrb[0].mxu0
    %v2226 = vadd.f32 0.0, %v2225
    %v2227 = vpop.f32.mrb[0].mxu0
    %2228 = vmatprep.mubr.f32.mxu0 %v2132
    %2229 = vmatmul.mubr.f32.gmra.mrb[0].mxu0 %v2131
    %v2230 = vpop.f32.mrb[0].mxu0
    %v2231 = vadd.f32 0.0, %v2230
    %v2232 = vpop.f32.mrb[0].mxu0
    %2233 = vmatprep.mubr.f32.mxu0 %v2138
    %2234 = vmatmul.mubr.f32.gmra.mrb[0].mxu0 %v2137
    %v2235 = vpop.f32.mrb[0].mxu0
    %v2236 = vadd.f32 0.0, %v2235
    %v2237 = vpop.f32.mrb[0].mxu0
    %2238 = vmatprep.mubr.f32.mxu0 %v2144
    %2239 = vmatmul.mubr.f32.gmra.mrb[0].mxu0 %v2143
    %v2240 = vpop.f32.mrb[0].mxu0
    %v2241 = vadd.f32 0.0, %v2240
    %v2242 = vpop.f32.mrb[0].mxu0
    %2243 = vdwg.mxu0
    %2244 = vmatprep.subr.mxu0 0.0
    %2245 = vmatpush1.msra.mxu0 %v1915
    %2246 = vmatprep.subr.mxu0 0.0
    %2247 = vmatpush1.msra.mxu0 %v1916
    %2248 = vmatprep.subr.mxu0 0.0
    %2249 = vmatpush1.msra.mxu0 %v1917
    %2250 = vmatprep.subr.mxu0 0.0
    %2251 = vmatpush1.msra.mxu0 %v1918
    %2252 = vmatprep.subr.mxu0 0.0
    %2253 = vmatpush1.msra.mxu0 %v1919
    %2254 = vmatprep.subr.mxu0 0.0
    %2255 = vmatpush1.msra.mxu0 %v1920
    %2256 = vmatprep.subr.mxu0 0.0
    %2257 = vmatpush1.msra.mxu0 %v1921
    %2258 = vmatprep.subr.mxu0 0.0
    %2259 = vmatpush1.msra.mxu0 %v1922
    %2260 = vmatprep.subr.mxu0 0.0
    %2261 = vmatpush1.msra.mxu0 %v1923
    %2262 = vmatprep.subr.mxu0 0.0
    %2263 = vmatpush1.msra.mxu0 %v1924
    %2264 = vmatprep.subr.mxu0 0.0
    %2265 = vmatpush1.msra.mxu0 %v1925
    %2266 = vmatprep.subr.mxu0 0.0
    %2267 = vmatpush1.msra.mxu0 %v1926
    %2268 = vmatprep.subr.mxu0 0.0
    %2269 = vmatpush1.msra.mxu0 %v1927
    %2270 = vmatprep.subr.mxu0 0.0
    %2271 = vmatpush1.msra.mxu0 %v1928
    %2272 = vmatprep.subr.mxu0 0.0
    %2273 = vmatpush1.msra.mxu0 %v1929
    %2274 = vmatprep.subr.mxu0 0.0
    %2275 = vmatpush1.msra.mxu0 %v1930
    %2276 = vmatprep.subr.mxu0 0.0
    %2277 = vmatpush1.msra.mxu0 %v1931
    %2278 = vmatprep.subr.mxu0 0.0
    %2279 = vmatpush1.msra.mxu0 %v1932
    %2280 = vmatprep.subr.mxu0 0.0
    %2281 = vmatpush1.msra.mxu0 %v1933
    %2282 = vmatprep.subr.mxu0 0.0
    %2283 = vmatpush1.msra.mxu0 %v1934
    %2284 = vmatprep.subr.mxu0 0.0
    %2285 = vmatpush1.msra.mxu0 %v1935
    %2286 = vmatprep.subr.mxu0 0.0
    %2287 = vmatpush1.msra.mxu0 %v1936
    %2288 = vmatprep.subr.mxu0 0.0
    %2289 = vmatpush1.msra.mxu0 %v1937
    %2290 = vmatprep.subr.mxu0 0.0
    %2291 = vmatpush1.msra.mxu0 %v1938
    %2292 = vmatprep.subr.mxu0 0.0
    %2293 = vmatpush1.msra.mxu0 %v1939
    %2294 = vmatprep.subr.mxu0 0.0
    %2295 = vmatpush1.msra.mxu0 %v1940
    %2296 = vmatprep.subr.mxu0 0.0
    %2297 = vmatpush1.msra.mxu0 %v1941
    %2298 = vmatprep.subr.mxu0 0.0
    %2299 = vmatpush1.msra.mxu0 %v1942
    %2300 = vmatprep.subr.mxu0 0.0
    %2301 = vmatpush1.msra.mxu0 %v1943
    %2302 = vmatprep.subr.mxu0 0.0
    %2303 = vmatpush1.msra.mxu0 %v1944
    %2304 = vmatprep.subr.mxu0 0.0
    %2305 = vmatpush1.msra.mxu0 %v1945
    %2306 = vmatprep.subr.mxu0 0.0
    %2307 = vmatpush1.msra.mxu0 %v1946
    %2308 = vmatprep.mubr.f32.mxu0 %v2116
    %2309 = vmatmul.mubr.f32.gmra.mrb[0].mxu0 %v2115
    %v2310 = vpop.f32.mrb[0].mxu0
    %v2311 = vadd.f32 %v2216, %v2310
    %v2312 = vpop.f32.mrb[0].mxu0
    %2313 = vmatprep.mubr.f32.mxu0 %v2122
    %2314 = vmatmul.mubr.f32.gmra.mrb[0].mxu0 %v2121
    %v2315 = vpop.f32.mrb[0].mxu0
    %v2316 = vadd.f32 %v2221, %v2315
    %v2317 = vpop.f32.mrb[0].mxu0
    %2318 = vmatprep.mubr.f32.mxu0 %v2128
    %2319 = vmatmul.mubr.f32.gmra.mrb[0].mxu0 %v2127
    %v2320 = vpop.f32.mrb[0].mxu0
    %v2321 = vadd.f32 %v2226, %v2320
    %v2322 = vpop.f32.mrb[0].mxu0
    %2323 = vmatprep.mubr.f32.mxu0 %v2134
    %2324 = vmatmul.mubr.f32.gmra.mrb[0].mxu0 %v2133
    %v2325 = vpop.f32.mrb[0].mxu0
    %v2326 = vadd.f32 %v2231, %v2325
    %v2327 = vpop.f32.mrb[0].mxu0
    %2328 = vmatprep.mubr.f32.mxu0 %v2140
    %2329 = vmatmul.mubr.f32.gmra.mrb[0].mxu0 %v2139
    %v2330 = vpop.f32.mrb[0].mxu0
    %v2331 = vadd.f32 %v2236, %v2330
    %v2332 = vpop.f32.mrb[0].mxu0
    %2333 = vmatprep.mubr.f32.mxu0 %v2146
    %2334 = vmatmul.mubr.f32.gmra.mrb[0].mxu0 %v2145
    %v2335 = vpop.f32.mrb[0].mxu0
    %v2336 = vadd.f32 %v2241, %v2335
    %v2337 = vpop.f32.mrb[0].mxu0
    %2338 = vdwg.mxu0
    %2339 = vmatprep.subr.mxu0 0.0
    %2340 = vmatpush1.msra.mxu0 %v1947
    %2341 = vmatprep.subr.mxu0 0.0
    %2342 = vmatpush1.msra.mxu0 %v1948
    %2343 = vmatprep.subr.mxu0 0.0
    %2344 = vmatpush1.msra.mxu0 %v1949
    %2345 = vmatprep.subr.mxu0 0.0
    %2346 = vmatpush1.msra.mxu0 %v1950
    %2347 = vmatprep.subr.mxu0 0.0
    %2348 = vmatpush1.msra.mxu0 %v1951
    %2349 = vmatprep.subr.mxu0 0.0
    %2350 = vmatpush1.msra.mxu0 %v1952
    %2351 = vmatprep.subr.mxu0 0.0
    %2352 = vmatpush1.msra.mxu0 %v1953
    %2353 = vmatprep.subr.mxu0 0.0
    %2354 = vmatpush1.msra.mxu0 %v1954
    %2355 = vmatprep.subr.mxu0 0.0
    %2356 = vmatpush1.msra.mxu0 %v1955
    %2357 = vmatprep.subr.mxu0 0.0
    %2358 = vmatpush1.msra.mxu0 %v1956
    %2359 = vmatprep.subr.mxu0 0.0
    %2360 = vmatpush1.msra.mxu0 %v1957
    %2361 = vmatprep.subr.mxu0 0.0
    %2362 = vmatpush1.msra.mxu0 %v1958
    %2363 = vmatprep.subr.mxu0 0.0
    %2364 = vmatpush1.msra.mxu0 %v1959
    %2365 = vmatprep.subr.mxu0 0.0
    %2366 = vmatpush1.msra.mxu0 %v1960
    %2367 = vmatprep.subr.mxu0 0.0
    %2368 = vmatpush1.msra.mxu0 %v1961
    %2369 = vmatprep.subr.mxu0 0.0
    %2370 = vmatpush1.msra.mxu0 %v1962
    %2371 = vmatprep.subr.mxu0 0.0
    %2372 = vmatpush1.msra.mxu0 %v1963
    %2373 = vmatprep.subr.mxu0 0.0
    %2374 = vmatpush1.msra.mxu0 %v1964
    %2375 = vmatprep.subr.mxu0 0.0
    %2376 = vmatpush1.msra.mxu0 %v1965
    %2377 = vmatprep.subr.mxu0 0.0
    %2378 = vmatpush1.msra.mxu0 %v1966
    %2379 = vmatprep.subr.mxu0 0.0
    %2380 = vmatpush1.msra.mxu0 %v1967
    %2381 = vmatprep.subr.mxu0 0.0
    %2382 = vmatpush1.msra.mxu0 %v1968
    %2383 = vmatprep.subr.mxu0 0.0
    %2384 = vmatpush1.msra.mxu0 %v1969
    %2385 = vmatprep.subr.mxu0 0.0
    %2386 = vmatpush1.msra.mxu0 %v1970
    %2387 = vmatprep.subr.mxu0 0.0
    %2388 = vmatpush1.msra.mxu0 %v1971
    %2389 = vmatprep.subr.mxu0 0.0
    %2390 = vmatpush1.msra.mxu0 %v1972
    %2391 = vmatprep.subr.mxu0 0.0
    %2392 = vmatpush1.msra.mxu0 %v1973
    %2393 = vmatprep.subr.mxu0 0.0
    %2394 = vmatpush1.msra.mxu0 %v1974
    %2395 = vmatprep.subr.mxu0 0.0
    %2396 = vmatpush1.msra.mxu0 %v1975
    %2397 = vmatprep.subr.mxu0 0.0
    %2398 = vmatpush1.msra.mxu0 %v1976
    %2399 = vmatprep.subr.mxu0 0.0
    %2400 = vmatpush1.msra.mxu0 %v1977
    %2401 = vmatprep.subr.mxu0 0.0
    %2402 = vmatpush1.msra.mxu0 %v1978
    %2403 = vmatprep.mubr.f32.mxu0 %v2118
    %2404 = vmatmul.mubr.f32.gmra.mrb[0].mxu0 %v2117
    %v2405 = vpop.f32.mrb[0].mxu0
    %v2406 = vadd.f32 %v2311, %v2405
    %v2407 = vpop.f32.mrb[0].mxu0
    %2408 = vmatprep.mubr.f32.mxu0 %v2124
    %2409 = vmatmul.mubr.f32.gmra.mrb[0].mxu0 %v2123
    %v2410 = vpop.f32.mrb[0].mxu0
    %v2411 = vadd.f32 %v2316, %v2410
    %v2412 = vpop.f32.mrb[0].mxu0
    %2413 = vmatprep.mubr.f32.mxu0 %v2130
    %2414 = vmatmul.mubr.f32.gmra.mrb[0].mxu0 %v2129
    %v2415 = vpop.f32.mrb[0].mxu0
    %v2416 = vadd.f32 %v2321, %v2415
    %v2417 = vpop.f32.mrb[0].mxu0
    %2418 = vmatprep.mubr.f32.mxu0 %v2136
    %2419 = vmatmul.mubr.f32.gmra.mrb[0].mxu0 %v2135
    %v2420 = vpop.f32.mrb[0].mxu0
    %v2421 = vadd.f32 %v2326, %v2420
    %v2422 = vpop.f32.mrb[0].mxu0
    %2423 = vmatprep.mubr.f32.mxu0 %v2142
    %2424 = vmatmul.mubr.f32.gmra.mrb[0].mxu0 %v2141
    %v2425 = vpop.f32.mrb[0].mxu0
    %v2426 = vadd.f32 %v2331, %v2425
    %v2427 = vpop.f32.mrb[0].mxu0
    %2428 = vmatprep.mubr.f32.mxu0 %v2148
    %2429 = vmatmul.mubr.f32.gmra.mrb[0].mxu0 %v2147
    %v2430 = vpop.f32.mrb[0].mxu0
    %v2431 = vadd.f32 %v2336, %v2430
    %v2432 = vpop.f32.mrb[0].mxu0
    %2433 = vdwg.mxu0
    %v2434 = vld [vmem:[%s5] sm:$0xff]
    %v2435 = vld [vmem:[%s5 + $0x8] sm:$0xff]
    %v2436 = vld [vmem:[%s5 + $0x10] sm:$0xff]
    %v2437 = vld [vmem:[%s5 + $0x18] sm:$0xff]
    %v2438 = vld [vmem:[%s5 + $0x20] sm:$0xff]
    %v2439 = vld [vmem:[%s5 + $0x28] sm:$0xff]
    %v2440 = vld [vmem:[%s5 + $0x30] sm:$0xff]
    %v2441 = vld [vmem:[%s5 + $0x38] sm:$0xff]
    %v2442 = vld [vmem:[%s5 + $0x40] sm:$0xff]
    %v2443 = vld [vmem:[%s5 + $0x48] sm:$0xff]
    %v2444 = vld [vmem:[%s5 + $0x50] sm:$0xff]
    %v2445 = vld [vmem:[%s5 + $0x58] sm:$0xff]
    %v2446 = vld [vmem:[%s5 + $0x60] sm:$0xff]
    %v2447 = vld [vmem:[%s5 + $0x68] sm:$0xff]
    %v2448 = vld [vmem:[%s5 + $0x70] sm:$0xff]
    %v2449 = vld [vmem:[%s5 + $0x78] sm:$0xff]
    %vm2450 = vcmask 523264
    %v2452 = vsel %vm2450, %v2406, 0
    %v2455 = vsel %vm2450, %v2411, 0
    %v2458 = vsel %vm2450, %v2416, 0
    %v2461 = vsel %vm2450, %v2421, 0
    %v2464 = vsel %vm2450, %v2426, 0
    %v2467 = vsel %vm2450, %v2431, 0
    %2469 = vmatprep.subr.mxu0 %v2435
    %2470 = vmatpush1.msra.mxu0 %v2434
    %2471 = vmatprep.subr.mxu0 %v2437
    %2472 = vmatpush1.msra.mxu0 %v2436
    %2473 = vmatprep.subr.mxu0 %v2439
    %2474 = vmatpush1.msra.mxu0 %v2438
    %2475 = vmatprep.subr.mxu0 %v2441
    %2476 = vmatpush1.msra.mxu0 %v2440
    %2477 = vmatprep.subr.mxu0 %v2443
    %2478 = vmatpush1.msra.mxu0 %v2442
    %2479 = vmatprep.subr.mxu0 %v2445
    %2480 = vmatpush1.msra.mxu0 %v2444
    %2481 = vmatprep.subr.mxu0 %v2447
    %2482 = vmatpush1.msra.mxu0 %v2446
    %2483 = vmatprep.subr.mxu0 %v2449
    %2484 = vmatpush1.msra.mxu0 %v2448
    %2485 = vmatprep.subr.mxu0 0.0
    %2486 = vmatpush1.msra.mxu0 0.0
    %2487 = vmatprep.subr.mxu0 0.0
    %2488 = vmatpush1.msra.mxu0 0.0
    %2489 = vmatprep.subr.mxu0 0.0
    %2490 = vmatpush1.msra.mxu0 0.0
    %2491 = vmatprep.subr.mxu0 0.0
    %2492 = vmatpush1.msra.mxu0 0.0
    %2493 = vmatprep.subr.mxu0 0.0
    %2494 = vmatpush1.msra.mxu0 0.0
    %2495 = vmatprep.subr.mxu0 0.0
    %2496 = vmatpush1.msra.mxu0 0.0
    %2497 = vmatprep.subr.mxu0 0.0
    %2498 = vmatpush1.msra.mxu0 0.0
    %2499 = vmatprep.subr.mxu0 0.0
    %2500 = vmatpush1.msra.mxu0 0.0
    %2501 = vmatprep.subr.mxu0 0.0
    %2502 = vmatpush1.msra.mxu0 0.0
    %2503 = vmatprep.subr.mxu0 0.0
    %2504 = vmatpush1.msra.mxu0 0.0
    %2505 = vmatprep.subr.mxu0 0.0
    %2506 = vmatpush1.msra.mxu0 0.0
    %2507 = vmatprep.subr.mxu0 0.0
    %2508 = vmatpush1.msra.mxu0 0.0
    %2509 = vmatprep.subr.mxu0 0.0
    %2510 = vmatpush1.msra.mxu0 0.0
    %2511 = vmatprep.subr.mxu0 0.0
    %2512 = vmatpush1.msra.mxu0 0.0
    %2513 = vmatprep.subr.mxu0 0.0
    %2514 = vmatpush1.msra.mxu0 0.0
    %2515 = vmatprep.subr.mxu0 0.0
    %2516 = vmatpush1.msra.mxu0 0.0
    %2517 = vmatprep.subr.mxu0 0.0
    %2518 = vmatpush1.msra.mxu0 0.0
    %2519 = vmatprep.subr.mxu0 0.0
    %2520 = vmatpush1.msra.mxu0 0.0
    %2521 = vmatprep.subr.mxu0 0.0
    %2522 = vmatpush1.msra.mxu0 0.0
    %2523 = vmatprep.subr.mxu0 0.0
    %2524 = vmatpush1.msra.mxu0 0.0
    %2525 = vmatprep.subr.mxu0 0.0
    %2526 = vmatpush1.msra.mxu0 0.0
    %2527 = vmatprep.subr.mxu0 0.0
    %2528 = vmatpush1.msra.mxu0 0.0
    %2529 = vmatprep.subr.mxu0 0.0
    %2530 = vmatpush1.msra.mxu0 0.0
    %2531 = vmatprep.subr.mxu0 0.0
    %2532 = vmatpush1.msra.mxu0 0.0
    %2533 = vmatprep.mubr.f32.mxu0 0.0
    %2534 = vmatmul.mubr.f32.gmra.mrb[0].mxu0 %v2452
    %v2535 = vpop.f32.mrb[0].mxu0
    %v2536 = vadd.f32 0.0, %v2535
    %v2537 = vpop.f32.mrb[0].mxu0
    %v2538 = vadd.f32 0.0, %v2537
    %2539 = vmatprep.mubr.f32.mxu0 0.0
    %2540 = vmatmul.mubr.f32.gmra.mrb[0].mxu0 %v2455
    %v2541 = vpop.f32.mrb[0].mxu0
    %v2542 = vadd.f32 0.0, %v2541
    %v2543 = vpop.f32.mrb[0].mxu0
    %v2544 = vadd.f32 0.0, %v2543
    %2545 = vmatprep.mubr.f32.mxu0 0.0
    %2546 = vmatmul.mubr.f32.gmra.mrb[0].mxu0 %v2458
    %v2547 = vpop.f32.mrb[0].mxu0
    %v2548 = vadd.f32 0.0, %v2547
    %v2549 = vpop.f32.mrb[0].mxu0
    %v2550 = vadd.f32 0.0, %v2549
    %2551 = vmatprep.mubr.f32.mxu0 0.0
    %2552 = vmatmul.mubr.f32.gmra.mrb[0].mxu0 %v2461
    %v2553 = vpop.f32.mrb[0].mxu0
    %v2554 = vadd.f32 0.0, %v2553
    %v2555 = vpop.f32.mrb[0].mxu0
    %v2556 = vadd.f32 0.0, %v2555
    %2557 = vmatprep.mubr.f32.mxu0 0.0
    %2558 = vmatmul.mubr.f32.gmra.mrb[0].mxu0 %v2464
    %v2559 = vpop.f32.mrb[0].mxu0
    %v2560 = vadd.f32 0.0, %v2559
    %v2561 = vpop.f32.mrb[0].mxu0
    %v2562 = vadd.f32 0.0, %v2561
    %2563 = vmatprep.mubr.f32.mxu0 0.0
    %2564 = vmatmul.mubr.f32.gmra.mrb[0].mxu0 %v2467
    %v2565 = vpop.f32.mrb[0].mxu0
    %v2566 = vadd.f32 0.0, %v2565
    %v2567 = vpop.f32.mrb[0].mxu0
    %v2568 = vadd.f32 0.0, %v2567
    %2569 = vdwg.mxu0
    %v2570 = vld [vmem:[%s6] sm:$0xff]
    %v2571 = vld [vmem:[%s6 + $0x8] sm:$0xff]
    %v2572 = vld [vmem:[%s6 + $0x10] sm:$0xff]
    %v2573 = vld [vmem:[%s6 + $0x18] sm:$0xff]
    %v2574 = vld [vmem:[%s6 + $0x20] sm:$0xff]
    %v2575 = vld [vmem:[%s6 + $0x28] sm:$0xff]
    %v2576 = vld [vmem:[%s6 + $0x30] sm:$0xff]
    %v2577 = vld [vmem:[%s6 + $0x38] sm:$0xff]
    %v2578 = vld [vmem:[%s6 + $0x40] sm:$0xff]
    %v2579 = vld [vmem:[%s6 + $0x48] sm:$0xff]
    %v2580 = vld [vmem:[%s6 + $0x50] sm:$0xff]
    %v2581 = vld [vmem:[%s6 + $0x58] sm:$0xff]
    %v2582 = vmul.f32 %v2536, %v2570
    %v2583 = vmul.f32 %v2538, %v2571
    %v2584 = vmul.f32 %v2542, %v2572
    %v2585 = vmul.f32 %v2544, %v2573
    %v2586 = vmul.f32 %v2548, %v2574
    %v2587 = vmul.f32 %v2550, %v2575
    %v2588 = vmul.f32 %v2554, %v2576
    %v2589 = vmul.f32 %v2556, %v2577
    %v2590 = vmul.f32 %v2560, %v2578
    %v2591 = vmul.f32 %v2562, %v2579
    %v2592 = vmul.f32 %v2566, %v2580
    %v2593 = vmul.f32 %v2568, %v2581
    %v2594 = vld [vmem:[%s7] sm:$0xff]
    %v2595 = vld [vmem:[%s7 + $0x8] sm:$0xff]
    %v2596 = vld [vmem:[%s7 + $0x10] sm:$0xff]
    %v2597 = vld [vmem:[%s7 + $0x18] sm:$0xff]
    %v2598 = vld [vmem:[%s7 + $0x20] sm:$0xff]
    %v2599 = vld [vmem:[%s7 + $0x28] sm:$0xff]
    %v2600 = vld [vmem:[%s7 + $0x30] sm:$0xff]
    %v2601 = vld [vmem:[%s7 + $0x38] sm:$0xff]
    %v2602 = vld [vmem:[%s7 + $0x40] sm:$0xff]
    %v2603 = vld [vmem:[%s7 + $0x48] sm:$0xff]
    %v2604 = vld [vmem:[%s7 + $0x50] sm:$0xff]
    %v2605 = vld [vmem:[%s7 + $0x58] sm:$0xff]
    %v2606 = vld [vmem:[%s7 + $0x60] sm:$0xff]
    %v2607 = vld [vmem:[%s7 + $0x68] sm:$0xff]
    %v2608 = vld [vmem:[%s7 + $0x70] sm:$0xff]
    %v2609 = vld [vmem:[%s7 + $0x78] sm:$0xff]
    %v2610 = vld [vmem:[%s7 + $0x80] sm:$0xff]
    %v2611 = vld [vmem:[%s7 + $0x88] sm:$0xff]
    %v2612 = vld [vmem:[%s7 + $0x90] sm:$0xff]
    %v2613 = vld [vmem:[%s7 + $0x98] sm:$0xff]
    %v2614 = vld [vmem:[%s7 + $0xa0] sm:$0xff]
    %v2615 = vld [vmem:[%s7 + $0xa8] sm:$0xff]
    %v2616 = vld [vmem:[%s7 + $0xb0] sm:$0xff]
    %v2617 = vld [vmem:[%s7 + $0xb8] sm:$0xff]
    %v2618 = vld [vmem:[%s7 + $0xc0] sm:$0xff]
    %v2619 = vld [vmem:[%s7 + $0xc8] sm:$0xff]
    %v2620 = vld [vmem:[%s7 + $0xd0] sm:$0xff]
    %v2621 = vld [vmem:[%s7 + $0xd8] sm:$0xff]
    %v2622 = vld [vmem:[%s7 + $0xe0] sm:$0xff]
    %v2623 = vld [vmem:[%s7 + $0xe8] sm:$0xff]
    %vm2624 = vcmask 916480
    %v2626 = vsel %vm2624, %v2583, 0
    %v2629 = vsel %vm2624, %v2585, 0
    %v2632 = vsel %vm2624, %v2587, 0
    %v2635 = vsel %vm2624, %v2589, 0
    %v2638 = vsel %vm2624, %v2591, 0
    %v2641 = vsel %vm2624, %v2593, 0
    %2643 = vmatprep.subr.mxu0 0.0
    %2644 = vmatpush1.msra.mxu0 %v2594
    %2645 = vmatprep.subr.mxu0 0.0
    %2646 = vmatpush1.msra.mxu0 %v2595
    %2647 = vmatprep.subr.mxu0 0.0
    %2648 = vmatpush1.msra.mxu0 %v2596
    %2649 = vmatprep.subr.mxu0 0.0
    %2650 = vmatpush1.msra.mxu0 %v2597
    %2651 = vmatprep.subr.mxu0 0.0
    %2652 = vmatpush1.msra.mxu0 %v2598
    %2653 = vmatprep.subr.mxu0 0.0
    %2654 = vmatpush1.msra.mxu0 %v2599
    %2655 = vmatprep.subr.mxu0 0.0
    %2656 = vmatpush1.msra.mxu0 %v2600
    %2657 = vmatprep.subr.mxu0 0.0
    %2658 = vmatpush1.msra.mxu0 %v2601
    %2659 = vmatprep.subr.mxu0 0.0
    %2660 = vmatpush1.msra.mxu0 %v2602
    %2661 = vmatprep.subr.mxu0 0.0
    %2662 = vmatpush1.msra.mxu0 %v2603
    %2663 = vmatprep.subr.mxu0 0.0
    %2664 = vmatpush1.msra.mxu0 %v2604
    %2665 = vmatprep.subr.mxu0 0.0
    %2666 = vmatpush1.msra.mxu0 %v2605
    %2667 = vmatprep.subr.mxu0 0.0
    %2668 = vmatpush1.msra.mxu0 %v2606
    %2669 = vmatprep.subr.mxu0 0.0
    %2670 = vmatpush1.msra.mxu0 %v2607
    %2671 = vmatprep.subr.mxu0 0.0
    %2672 = vmatpush1.msra.mxu0 %v2608
    %2673 = vmatprep.subr.mxu0 0.0
    %2674 = vmatpush1.msra.mxu0 %v2609
    %2675 = vmatprep.subr.mxu0 0.0
    %2676 = vmatpush1.msra.mxu0 %v2610
    %2677 = vmatprep.subr.mxu0 0.0
    %2678 = vmatpush1.msra.mxu0 %v2611
    %2679 = vmatprep.subr.mxu0 0.0
    %2680 = vmatpush1.msra.mxu0 %v2612
    %2681 = vmatprep.subr.mxu0 0.0
    %2682 = vmatpush1.msra.mxu0 %v2613
    %2683 = vmatprep.subr.mxu0 0.0
    %2684 = vmatpush1.msra.mxu0 %v2614
    %2685 = vmatprep.subr.mxu0 0.0
    %2686 = vmatpush1.msra.mxu0 %v2615
    %2687 = vmatprep.subr.mxu0 0.0
    %2688 = vmatpush1.msra.mxu0 %v2616
    %2689 = vmatprep.subr.mxu0 0.0
    %2690 = vmatpush1.msra.mxu0 %v2617
    %2691 = vmatprep.subr.mxu0 0.0
    %2692 = vmatpush1.msra.mxu0 %v2618
    %2693 = vmatprep.subr.mxu0 0.0
    %2694 = vmatpush1.msra.mxu0 %v2619
    %2695 = vmatprep.subr.mxu0 0.0
    %2696 = vmatpush1.msra.mxu0 %v2620
    %2697 = vmatprep.subr.mxu0 0.0
    %2698 = vmatpush1.msra.mxu0 %v2621
    %2699 = vmatprep.subr.mxu0 0.0
    %2700 = vmatpush1.msra.mxu0 %v2622
    %2701 = vmatprep.subr.mxu0 0.0
    %2702 = vmatpush1.msra.mxu0 %v2623
    %2703 = vmatprep.subr.mxu0 0.0
    %2704 = vmatpush1.msra.mxu0 0.0
    %2705 = vmatprep.subr.mxu0 0.0
    %2706 = vmatpush1.msra.mxu0 0.0
    %2707 = vmatprep.mubr.f32.mxu0 %v2626
    %2708 = vmatmul.mubr.f32.gmra.mrb[0].mxu0 %v2582
    %v2709 = vpop.f32.mrb[0].mxu0
    %v2710 = vadd.f32 0.0, %v2709
    %v2711 = vpop.f32.mrb[0].mxu0
    %2712 = vmatprep.mubr.f32.mxu0 %v2629
    %2713 = vmatmul.mubr.f32.gmra.mrb[0].mxu0 %v2584
    %v2714 = vpop.f32.mrb[0].mxu0
    %v2715 = vadd.f32 0.0, %v2714
    %v2716 = vpop.f32.mrb[0].mxu0
    %2717 = vmatprep.mubr.f32.mxu0 %v2632
    %2718 = vmatmul.mubr.f32.gmra.mrb[0].mxu0 %v2586
    %v2719 = vpop.f32.mrb[0].mxu0
    %v2720 = vadd.f32 0.0, %v2719
    %v2721 = vpop.f32.mrb[0].mxu0
    %2722 = vmatprep.mubr.f32.mxu0 %v2635
    %2723 = vmatmul.mubr.f32.gmra.mrb[0].mxu0 %v2588
    %v2724 = vpop.f32.mrb[0].mxu0
    %v2725 = vadd.f32 0.0, %v2724
    %v2726 = vpop.f32.mrb[0].mxu0
    %2727 = vmatprep.mubr.f32.mxu0 %v2638
    %2728 = vmatmul.mubr.f32.gmra.mrb[0].mxu0 %v2590
    %v2729 = vpop.f32.mrb[0].mxu0
    %v2730 = vadd.f32 0.0, %v2729
    %v2731 = vpop.f32.mrb[0].mxu0
    %2732 = vmatprep.mubr.f32.mxu0 %v2641
    %2733 = vmatmul.mubr.f32.gmra.mrb[0].mxu0 %v2592
    %v2734 = vpop.f32.mrb[0].mxu0
    %v2735 = vadd.f32 0.0, %v2734
    %v2736 = vpop.f32.mrb[0].mxu0
    %2737 = vdwg.mxu0
    %v2738 = vmul.u32 %v1980, 24
    %vm2739 = vcmp.ge.s32.totalorder %v1987, %v2738
    %v2740 = vadd.s32 %v2738, 24
    %vm2741 = vcmp.lt.s32.totalorder %v1987, %v2740
    %vm2742 = vmand %vm2739, %vm2741
    %v2743 = vsel %vm2742, 1.0, 0.0
    %v2744 = vld [vmem:[%s8] sm:$0x1]
    %v2746 = vlaneseq
    %v2747 = vshrl.u32 %v2746, 7
    %v2748 = vsub.s32 0, %v2747
    %v2749 = vrot.slane %v2744, %v2748
    %vm2751 = vcmask 392192
    %v2753 = vsel %vm2751, %v2743, 0
    %2755 = vmatprep.subr.mxu0 0.0
    %2756 = vmatpush1.msra.mxu0 %v2710
    %2757 = vmatprep.subr.mxu0 0.0
    %2758 = vmatpush1.msra.mxu0 %v2715
    %2759 = vmatprep.subr.mxu0 0.0
    %2760 = vmatpush1.msra.mxu0 %v2720
    %2761 = vmatprep.subr.mxu0 0.0
    %2762 = vmatpush1.msra.mxu0 %v2725
    %2763 = vmatprep.subr.mxu0 0.0
    %2764 = vmatpush1.msra.mxu0 %v2730
    %2765 = vmatprep.subr.mxu0 0.0
    %2766 = vmatpush1.msra.mxu0 %v2735
    %2767 = vmatprep.subr.mxu0 0.0
    %2768 = vmatpush1.msra.mxu0 0.0
    %2769 = vmatprep.subr.mxu0 0.0
    %2770 = vmatpush1.msra.mxu0 0.0
    %2771 = vmatprep.subr.mxu0 0.0
    %2772 = vmatpush1.msra.mxu0 0.0
    %2773 = vmatprep.subr.mxu0 0.0
    %2774 = vmatpush1.msra.mxu0 0.0
    %2775 = vmatprep.subr.mxu0 0.0
    %2776 = vmatpush1.msra.mxu0 0.0
    %2777 = vmatprep.subr.mxu0 0.0
    %2778 = vmatpush1.msra.mxu0 0.0
    %2779 = vmatprep.subr.mxu0 0.0
    %2780 = vmatpush1.msra.mxu0 0.0
    %2781 = vmatprep.subr.mxu0 0.0
    %2782 = vmatpush1.msra.mxu0 0.0
    %2783 = vmatprep.subr.mxu0 0.0
    %2784 = vmatpush1.msra.mxu0 0.0
    %2785 = vmatprep.subr.mxu0 0.0
    %2786 = vmatpush1.msra.mxu0 0.0
    %2787 = vmatprep.subr.mxu0 0.0
    %2788 = vmatpush1.msra.mxu0 0.0
    %2789 = vmatprep.subr.mxu0 0.0
    %2790 = vmatpush1.msra.mxu0 0.0
    %2791 = vmatprep.subr.mxu0 0.0
    %2792 = vmatpush1.msra.mxu0 0.0
    %2793 = vmatprep.subr.mxu0 0.0
    %2794 = vmatpush1.msra.mxu0 0.0
    %2795 = vmatprep.subr.mxu0 0.0
    %2796 = vmatpush1.msra.mxu0 0.0
    %2797 = vmatprep.subr.mxu0 0.0
    %2798 = vmatpush1.msra.mxu0 0.0
    %2799 = vmatprep.subr.mxu0 0.0
    %2800 = vmatpush1.msra.mxu0 0.0
    %2801 = vmatprep.subr.mxu0 0.0
    %2802 = vmatpush1.msra.mxu0 0.0
    %2803 = vmatprep.subr.mxu0 0.0
    %2804 = vmatpush1.msra.mxu0 0.0
    %2805 = vmatprep.subr.mxu0 0.0
    %2806 = vmatpush1.msra.mxu0 0.0
    %2807 = vmatprep.subr.mxu0 0.0
    %2808 = vmatpush1.msra.mxu0 0.0
    %2809 = vmatprep.subr.mxu0 0.0
    %2810 = vmatpush1.msra.mxu0 0.0
    %2811 = vmatprep.subr.mxu0 0.0
    %2812 = vmatpush1.msra.mxu0 0.0
    %2813 = vmatprep.subr.mxu0 0.0
    %2814 = vmatpush1.msra.mxu0 0.0
    %2815 = vmatprep.subr.mxu0 0.0
    %2816 = vmatpush1.msra.mxu0 0.0
    %2817 = vmatprep.subr.mxu0 0.0
    %2818 = vmatpush1.msra.mxu0 0.0
    %2819 = vmatprep.mubr.f32.mxu0 0.0
    %2820 = vmatmul.mubr.f32.gmra.mrb[0].mxu0 %v2753
    %v2821 = vpop.f32.mrb[0].mxu0
    %v2822 = vadd.f32 %v2749, %v2821
    %v2823 = vpop.f32.mrb[0].mxu0
    %2824 = vdwg.mxu0
    %vm2825 = vcmask 74752
    %2826 = vst.msk [vmem:[#allocation2] sm:$0x3] %vm2825, %v2822
    // Predicated region
    $region38: #{my_network_forward.1} parent=1 // pred_check
      _
    $region39: #{my_network_forward.1} parent=1 // pred_check_branch
      %2828 = sbr.rel (0) target = $region41
    $region40: #{my_network_forward.1} parent=1 // pred_region
      %s2830 = ssub.s32 32, 32
      %2831 = vsyncadd [#allocation3], %s2830
      %s2833 = sshll.u32 [#allocation2], 4
      %s2834 = int_to_ptr.vmem [resolvable:$true] %s2833
      %2836 = dma.vmem_to_hbm [thread:$0]  %s2834, 32, %s9, [#allocation3]
    $region41: #{my_network_forward.1} parent=1 // pred_fallthru
      _
    // Predicated region
    $region42: #{my_network_forward.1} parent=1 // pred_check
      _
    $region43: #{my_network_forward.1} parent=1 // pred_check_branch
      %2838 = sbr.rel (0) target = $region45
    $region44: #{my_network_forward.1} parent=1 // pred_region
      %2839 = dma.done [#allocation3], 32
    $region45: #{my_network_forward.1} parent=1 // pred_fallthru
      _
    %2840 = vsyncpa [#allocation3], 1

</llo_original>
